<compile_context>
chip_gen: v6e
topology: v6e:2x2x1
jax: 0.10.0
libtpu: 0.0.40
codegen_flags: <defaults>
</compile_context>

<pallas_src>
import jax
import jax.numpy as jnp
from jax import lax
from jax.experimental import pallas as pl
from jax.experimental.pallas import tpu as pltpu

EPS = 1e-3  # BatchNorm2d eps


def _dwconv_bn_kernel(xp_ref, w_ref, gamma_ref, beta_ref, o_ref):
    # xp_ref   : (N, Hp, Wp, C) zero-padded NHWC input, f32 (C lane-dense = 256)
    # w_ref    : (9, C) depthwise 3x3 taps, flattened row-major (kh*3 + kw)
    # gamma_ref: (1, 1, 1, C) BN scale
    # beta_ref : (1, 1, 1, C) BN shift
    # o_ref    : (N, H, Wp, C) output at full padded width (cols W..Wp-1 are junk,
    #            dropped by the wrapper; keeps the store unmasked/lane-dense)
    N, Hp, Wp, C = xp_ref.shape
    H, W = Hp - 2, Wp - 2

    xp = xp_ref[...]

    # Width shifts via XLU sublane rotations at full padded width.
    # roll by (Wp - kw) == roll by -kw, so xw[kw][..., w, :] == xp[..., w+kw, :]
    # for w < W (no wraparound in the columns we keep).
    xw = [xp] + [pltpu.roll(xp, shift=Wp - kw, axis=2) for kw in (1, 2)]

    # 3x3 depthwise conv; H-axis slices are leading-dim (free).
    acc = jnp.zeros((N, H, Wp, C), jnp.float32)
    for kh in range(3):
        for kw in range(3):
            tap = w_ref[kh * 3 + kw, :]                         # (C,)
            acc = acc + xw[kw][:, kh:kh + H, :, :] * tap

    # BatchNorm2d (training mode): biased batch stats over the N*H*W real pixels.
    # Columns W..Wp-1 of acc are roll-wraparound junk -> mask them out of the
    # statistics only (they are sliced away by the wrapper).
    cnt = jnp.float32(N * H * W)
    wmask = (lax.broadcasted_iota(jnp.int32, (1, 1, Wp, C), 2) < W
             ).astype(jnp.float32)
    mean = jnp.sum(acc * wmask, axis=(0, 1, 2), keepdims=True) / cnt   # (1,1,1,C)
    d = (acc - mean) * wmask
    var = jnp.sum(d * d, axis=(0, 1, 2), keepdims=True) / cnt          # >= 0 (two-pass)
    inv = lax.rsqrt(var + EPS)
    o_ref[...] = (acc - mean) * (inv * gamma_ref[...]) + beta_ref[...]


def dwconv_bn(x_nchw, w_dw, gamma, beta):
    """x_nchw: (N, C, H, W); w_dw: (C, 1, 3, 3) depthwise weight (PyTorch layout)."""
    N, C, H, W = x_nchw.shape
    CP = pl.cdiv(C, 128) * 128          # lane-dense padded channel count (256)
    pc = CP - C
    Hp, Wp = H + 2, W + 2

    # Layout plumbing: NCHW -> NHWC, then ONE pad op fusing the 3x3/padding=1
    # spatial zero-pad with the channel pad to 256 lanes.
    # TODO(synk): if the consumer accepts NHWC, both transposes can be dropped.
    x_nhwc = jnp.transpose(x_nchw, (0, 2, 3, 1)).astype(jnp.float32)
    xp = jnp.pad(x_nhwc, ((0, 0), (1, 1), (1, 1), (0, pc)))

    w = jnp.transpose(w_dw[:, 0, :, :], (1, 2, 0)).reshape(9, C).astype(jnp.float32)
    w = jnp.pad(w, ((0, 0), (0, pc)))
    g = jnp.pad(gamma.astype(jnp.float32), (0, pc)).reshape(1, 1, 1, CP)
    b = jnp.pad(beta.astype(jnp.float32), (0, pc)).reshape(1, 1, 1, CP)

    # Single grid step, full-array VMEM blocks (total footprint < 2 MB).
    out_p = pl.pallas_call(
        _dwconv_bn_kernel,
        out_shape=jax.ShapeDtypeStruct((N, H, Wp, CP), jnp.float32),
        grid=(1,),
        in_specs=[
            pl.BlockSpec((N, Hp, Wp, CP), lambda i: (0, 0, 0, 0)),
            pl.BlockSpec((9, CP), lambda i: (0, 0)),
            pl.BlockSpec((1, 1, 1, CP), lambda i: (0, 0, 0, 0)),
            pl.BlockSpec((1, 1, 1, CP), lambda i: (0, 0, 0, 0)),
        ],
        out_specs=pl.BlockSpec((N, H, Wp, CP), lambda i: (0, 0, 0, 0)),
        compiler_params=pltpu.CompilerParams(
            dimension_semantics=("arbitrary",)),
    )(xp, w, g, b)

    # Drop the junk width columns and the pad channels; fuse into the
    # (required) NHWC -> NCHW transpose.
    return jnp.transpose(out_p[:, :, :W, :C], (0, 3, 1, 2))


def reference(x, w_dw, gamma, beta):
    """Pure-JAX reference matching the PyTorch training-mode forward."""
    C = x.shape[1]
    y = lax.conv_general_dilated(
        x, w_dw, window_strides=(1, 1), padding=((1, 1), (1, 1)),
        dimension_numbers=("NCHW", "OIHW", "NCHW"), feature_group_count=C)
    mean = jnp.mean(y, axis=(0, 2, 3), keepdims=True)
    var = jnp.mean((y - mean) ** 2, axis=(0, 2, 3), keepdims=True)
    return ((y - mean) / jnp.sqrt(var + EPS)
            * gamma.reshape(1, C, 1, 1) + beta.reshape(1, C, 1, 1))


if __name__ == "__main__":
    key = jax.random.PRNGKey(0)
    kx, kw, kg, kb = jax.random.split(key, 4)

    # Shapes implied by the module: x83 is (1, 200, 14, 14).
    N, C, H, W = 1, 200, 14, 14
    x = jax.random.normal(kx, (N, C, H, W), jnp.float32)
    w_dw = 0.1 * jax.random.normal(kw, (C, 1, 3, 3), jnp.float32)     # Conv2d weight
    gamma = 1.0 + 0.1 * jax.random.normal(kg, (C,), jnp.float32)      # BN weight
    beta = 0.1 * jax.random.normal(kb, (C,), jnp.float32)             # BN bias

    # TODO(synk): PyTorch training-mode BN also updates running_mean/var
    # (momentum=0.01); only the output tensor is produced here.
    fn = jax.jit(dwconv_bn)
    out = jax.block_until_ready(fn(x, w_dw, gamma, beta))

    ref = reference(x, w_dw, gamma, beta)
    assert out.shape == (N, C, H, W), out.shape
    max_err = float(jnp.max(jnp.abs(out - ref)))
    assert jnp.allclose(out, ref, atol=1e-3, rtol=1e-3), max_err
    print("KERNEL_OK")
</pallas_src>

<mosaic_0001>
module attributes {stable_mosaic.version = 11 : i64} {
  func.func @_dwconv_bn_kernel(%arg0: i32, %arg1: memref<1x16x16x256xf32, #tpu.memory_space<vmem>>, %arg2: memref<9x256xf32, #tpu.memory_space<vmem>>, %arg3: memref<1x1x1x256xf32, #tpu.memory_space<vmem>>, %arg4: memref<1x1x1x256xf32, #tpu.memory_space<vmem>>, %arg5: memref<1x14x16x256xf32, #tpu.memory_space<vmem>>) attributes {dimension_semantics = [#tpu.dimension_semantics<arbitrary>], iteration_bounds = array<i64: 1>, scalar_prefetch = 0 : i64, scratch_operands = 0 : i64, tpu.core_type = #tpu.core_type<tc>, window_params = [{pipeline_mode = #tpu.pipeline_mode<synchronous>, transform_indices = @transform_0, window_bounds = array<i64: 1, 16, 16, 256>}, {pipeline_mode = #tpu.pipeline_mode<synchronous>, transform_indices = @transform_1, window_bounds = array<i64: 9, 256>}, {pipeline_mode = #tpu.pipeline_mode<synchronous>, transform_indices = @transform_2, window_bounds = array<i64: 1, 1, 1, 256>}, {pipeline_mode = #tpu.pipeline_mode<synchronous>, transform_indices = @transform_3, window_bounds = array<i64: 1, 1, 1, 256>}, {pipeline_mode = #tpu.pipeline_mode<synchronous>, transform_indices = @transform_4, window_bounds = array<i64: 1, 14, 16, 256>}]} {
    %c0 = arith.constant 0 : index
    %c0_0 = arith.constant 0 : index
    %c0_1 = arith.constant 0 : index
    %c0_2 = arith.constant 0 : index
    %0 = vector.load %arg1[%c0, %c0_0, %c0_1, %c0_2] : memref<1x16x16x256xf32, #tpu.memory_space<vmem>>, vector<1x16x16x256xf32>
    %c15_i32 = arith.constant 15 : i32
    %1 = tpu.dynamic_rotate %0 by %c15_i32 dim 2 : vector<1x16x16x256xf32>, i32 -> vector<1x16x16x256xf32>
    %c14_i32 = arith.constant 14 : i32
    %2 = tpu.dynamic_rotate %0 by %c14_i32 dim 2 : vector<1x16x16x256xf32>, i32 -> vector<1x16x16x256xf32>
    %cst = arith.constant 0.000000e+00 : f32
    %3 = vector.broadcast %cst : f32 to vector<1x14x16x256xf32>
    %c0_3 = arith.constant 0 : index
    %c0_4 = arith.constant 0 : index
    %4 = vector.load %arg2[%c0_3, %c0_4] : memref<9x256xf32, #tpu.memory_space<vmem>>, vector<1x256xf32>
    %5 = vector.shape_cast %4 : vector<1x256xf32> to vector<256xf32>
    %6 = vector.extract_strided_slice %0 {offsets = [0, 0, 0, 0], sizes = [1, 14, 16, 256], strides = [1, 1, 1, 1]} : vector<1x16x16x256xf32> to vector<1x14x16x256xf32>
    %7 = vector.shape_cast %5 : vector<256xf32> to vector<1x1x1x256xf32>
    %8 = vector.broadcast %7 : vector<1x1x1x256xf32> to vector<1x14x16x256xf32>
    %9 = arith.mulf %6, %8 : vector<1x14x16x256xf32>
    %10 = arith.addf %3, %9 : vector<1x14x16x256xf32>
    %c1 = arith.constant 1 : index
    %c0_5 = arith.constant 0 : index
    %11 = vector.load %arg2[%c1, %c0_5] : memref<9x256xf32, #tpu.memory_space<vmem>>, vector<1x256xf32>
    %12 = vector.shape_cast %11 : vector<1x256xf32> to vector<256xf32>
    %13 = vector.extract_strided_slice %1 {offsets = [0, 0, 0, 0], sizes = [1, 14, 16, 256], strides = [1, 1, 1, 1]} : vector<1x16x16x256xf32> to vector<1x14x16x256xf32>
    %14 = vector.shape_cast %12 : vector<256xf32> to vector<1x1x1x256xf32>
    %15 = vector.broadcast %14 : vector<1x1x1x256xf32> to vector<1x14x16x256xf32>
    %16 = arith.mulf %13, %15 : vector<1x14x16x256xf32>
    %17 = arith.addf %10, %16 : vector<1x14x16x256xf32>
    %c2 = arith.constant 2 : index
    %c0_6 = arith.constant 0 : index
    %18 = vector.load %arg2[%c2, %c0_6] : memref<9x256xf32, #tpu.memory_space<vmem>>, vector<1x256xf32>
    %19 = vector.shape_cast %18 : vector<1x256xf32> to vector<256xf32>
    %20 = vector.extract_strided_slice %2 {offsets = [0, 0, 0, 0], sizes = [1, 14, 16, 256], strides = [1, 1, 1, 1]} : vector<1x16x16x256xf32> to vector<1x14x16x256xf32>
    %21 = vector.shape_cast %19 : vector<256xf32> to vector<1x1x1x256xf32>
    %22 = vector.broadcast %21 : vector<1x1x1x256xf32> to vector<1x14x16x256xf32>
    %23 = arith.mulf %20, %22 : vector<1x14x16x256xf32>
    %24 = arith.addf %17, %23 : vector<1x14x16x256xf32>
    %c3 = arith.constant 3 : index
    %c0_7 = arith.constant 0 : index
    %25 = vector.load %arg2[%c3, %c0_7] : memref<9x256xf32, #tpu.memory_space<vmem>>, vector<1x256xf32>
    %26 = vector.shape_cast %25 : vector<1x256xf32> to vector<256xf32>
    %27 = vector.extract_strided_slice %0 {offsets = [0, 1, 0, 0], sizes = [1, 14, 16, 256], strides = [1, 1, 1, 1]} : vector<1x16x16x256xf32> to vector<1x14x16x256xf32>
    %28 = vector.shape_cast %26 : vector<256xf32> to vector<1x1x1x256xf32>
    %29 = vector.broadcast %28 : vector<1x1x1x256xf32> to vector<1x14x16x256xf32>
    %30 = arith.mulf %27, %29 : vector<1x14x16x256xf32>
    %31 = arith.addf %24, %30 : vector<1x14x16x256xf32>
    %c4 = arith.constant 4 : index
    %c0_8 = arith.constant 0 : index
    %32 = vector.load %arg2[%c4, %c0_8] : memref<9x256xf32, #tpu.memory_space<vmem>>, vector<1x256xf32>
    %33 = vector.shape_cast %32 : vector<1x256xf32> to vector<256xf32>
    %34 = vector.extract_strided_slice %1 {offsets = [0, 1, 0, 0], sizes = [1, 14, 16, 256], strides = [1, 1, 1, 1]} : vector<1x16x16x256xf32> to vector<1x14x16x256xf32>
    %35 = vector.shape_cast %33 : vector<256xf32> to vector<1x1x1x256xf32>
    %36 = vector.broadcast %35 : vector<1x1x1x256xf32> to vector<1x14x16x256xf32>
    %37 = arith.mulf %34, %36 : vector<1x14x16x256xf32>
    %38 = arith.addf %31, %37 : vector<1x14x16x256xf32>
    %c5 = arith.constant 5 : index
    %c0_9 = arith.constant 0 : index
    %39 = vector.load %arg2[%c5, %c0_9] : memref<9x256xf32, #tpu.memory_space<vmem>>, vector<1x256xf32>
    %40 = vector.shape_cast %39 : vector<1x256xf32> to vector<256xf32>
    %41 = vector.extract_strided_slice %2 {offsets = [0, 1, 0, 0], sizes = [1, 14, 16, 256], strides = [1, 1, 1, 1]} : vector<1x16x16x256xf32> to vector<1x14x16x256xf32>
    %42 = vector.shape_cast %40 : vector<256xf32> to vector<1x1x1x256xf32>
    %43 = vector.broadcast %42 : vector<1x1x1x256xf32> to vector<1x14x16x256xf32>
    %44 = arith.mulf %41, %43 : vector<1x14x16x256xf32>
    %45 = arith.addf %38, %44 : vector<1x14x16x256xf32>
    %c6 = arith.constant 6 : index
    %c0_10 = arith.constant 0 : index
    %46 = vector.load %arg2[%c6, %c0_10] : memref<9x256xf32, #tpu.memory_space<vmem>>, vector<1x256xf32>
    %47 = vector.shape_cast %46 : vector<1x256xf32> to vector<256xf32>
    %48 = vector.extract_strided_slice %0 {offsets = [0, 2, 0, 0], sizes = [1, 14, 16, 256], strides = [1, 1, 1, 1]} : vector<1x16x16x256xf32> to vector<1x14x16x256xf32>
    %49 = vector.shape_cast %47 : vector<256xf32> to vector<1x1x1x256xf32>
    %50 = vector.broadcast %49 : vector<1x1x1x256xf32> to vector<1x14x16x256xf32>
    %51 = arith.mulf %48, %50 : vector<1x14x16x256xf32>
    %52 = arith.addf %45, %51 : vector<1x14x16x256xf32>
    %c7 = arith.constant 7 : index
    %c0_11 = arith.constant 0 : index
    %53 = vector.load %arg2[%c7, %c0_11] : memref<9x256xf32, #tpu.memory_space<vmem>>, vector<1x256xf32>
    %54 = vector.shape_cast %53 : vector<1x256xf32> to vector<256xf32>
    %55 = vector.extract_strided_slice %1 {offsets = [0, 2, 0, 0], sizes = [1, 14, 16, 256], strides = [1, 1, 1, 1]} : vector<1x16x16x256xf32> to vector<1x14x16x256xf32>
    %56 = vector.shape_cast %54 : vector<256xf32> to vector<1x1x1x256xf32>
    %57 = vector.broadcast %56 : vector<1x1x1x256xf32> to vector<1x14x16x256xf32>
    %58 = arith.mulf %55, %57 : vector<1x14x16x256xf32>
    %59 = arith.addf %52, %58 : vector<1x14x16x256xf32>
    %c8 = arith.constant 8 : index
    %c0_12 = arith.constant 0 : index
    %60 = vector.load %arg2[%c8, %c0_12] : memref<9x256xf32, #tpu.memory_space<vmem>>, vector<1x256xf32>
    %61 = vector.shape_cast %60 : vector<1x256xf32> to vector<256xf32>
    %62 = vector.extract_strided_slice %2 {offsets = [0, 2, 0, 0], sizes = [1, 14, 16, 256], strides = [1, 1, 1, 1]} : vector<1x16x16x256xf32> to vector<1x14x16x256xf32>
    %63 = vector.shape_cast %61 : vector<256xf32> to vector<1x1x1x256xf32>
    %64 = vector.broadcast %63 : vector<1x1x1x256xf32> to vector<1x14x16x256xf32>
    %65 = arith.mulf %62, %64 : vector<1x14x16x256xf32>
    %66 = arith.addf %59, %65 : vector<1x14x16x256xf32>
    %67 = tpu.iota {dimensions = array<i32: 2>} : vector<1x1x16x256xi32>
    %c14_i32_13 = arith.constant 14 : i32
    %68 = vector.broadcast %c14_i32_13 : i32 to vector<1x1x16x256xi32>
    %69 = arith.cmpi slt, %67, %68 : vector<1x1x16x256xi32>
    %70 = arith.extui %69 : vector<1x1x16x256xi1> to vector<1x1x16x256xi32>
    %71 = arith.sitofp %70 : vector<1x1x16x256xi32> to vector<1x1x16x256xf32>
    %72 = vector.broadcast %71 : vector<1x1x16x256xf32> to vector<1x14x16x256xf32>
    %73 = arith.mulf %66, %72 : vector<1x14x16x256xf32>
    %cst_14 = arith.constant dense<0.000000e+00> : vector<256xf32>
    %74 = vector.multi_reduction <add>, %73, %cst_14 [0, 1, 2] : vector<1x14x16x256xf32> to vector<256xf32>
    %75 = vector.shape_cast %74 : vector<256xf32> to vector<1x1x1x256xf32>
    %cst_15 = arith.constant 1.960000e+02 : f32
    %76 = vector.broadcast %cst_15 : f32 to vector<1x1x1x256xf32>
    %77 = arith.divf %75, %76 : vector<1x1x1x256xf32>
    %78 = vector.broadcast %77 : vector<1x1x1x256xf32> to vector<1x14x16x256xf32>
    %79 = arith.subf %66, %78 : vector<1x14x16x256xf32>
    %80 = vector.broadcast %71 : vector<1x1x16x256xf32> to vector<1x14x16x256xf32>
    %81 = arith.mulf %79, %80 : vector<1x14x16x256xf32>
    %82 = arith.mulf %81, %81 : vector<1x14x16x256xf32>
    %cst_16 = arith.constant dense<0.000000e+00> : vector<256xf32>
    %83 = vector.multi_reduction <add>, %82, %cst_16 [0, 1, 2] : vector<1x14x16x256xf32> to vector<256xf32>
    %84 = vector.shape_cast %83 : vector<256xf32> to vector<1x1x1x256xf32>
    %cst_17 = arith.constant 1.960000e+02 : f32
    %85 = vector.broadcast %cst_17 : f32 to vector<1x1x1x256xf32>
    %86 = arith.divf %84, %85 : vector<1x1x1x256xf32>
    %cst_18 = arith.constant 1.000000e-03 : f32
    %87 = vector.broadcast %cst_18 : f32 to vector<1x1x1x256xf32>
    %88 = arith.addf %86, %87 : vector<1x1x1x256xf32>
    %89 = math.rsqrt %88 : vector<1x1x1x256xf32>
    %90 = vector.broadcast %77 : vector<1x1x1x256xf32> to vector<1x14x16x256xf32>
    %91 = arith.subf %66, %90 : vector<1x14x16x256xf32>
    %c0_19 = arith.constant 0 : index
    %c0_20 = arith.constant 0 : index
    %c0_21 = arith.constant 0 : index
    %c0_22 = arith.constant 0 : index
    %92 = vector.load %arg3[%c0_19, %c0_20, %c0_21, %c0_22] : memref<1x1x1x256xf32, #tpu.memory_space<vmem>>, vector<1x1x1x256xf32>
    %93 = arith.mulf %89, %92 : vector<1x1x1x256xf32>
    %94 = vector.broadcast %93 : vector<1x1x1x256xf32> to vector<1x14x16x256xf32>
    %95 = arith.mulf %91, %94 : vector<1x14x16x256xf32>
    %c0_23 = arith.constant 0 : index
    %c0_24 = arith.constant 0 : index
    %c0_25 = arith.constant 0 : index
    %c0_26 = arith.constant 0 : index
    %96 = vector.load %arg4[%c0_23, %c0_24, %c0_25, %c0_26] : memref<1x1x1x256xf32, #tpu.memory_space<vmem>>, vector<1x1x1x256xf32>
    %97 = vector.broadcast %96 : vector<1x1x1x256xf32> to vector<1x14x16x256xf32>
    %98 = arith.addf %95, %97 : vector<1x14x16x256xf32>
    %c0_27 = arith.constant 0 : index
    %c0_28 = arith.constant 0 : index
    %c0_29 = arith.constant 0 : index
    %c0_30 = arith.constant 0 : index
    %99 = vector.load %arg5[%c0_27, %c0_28, %c0_29, %c0_30] : memref<1x14x16x256xf32, #tpu.memory_space<vmem>>, vector<1x14x16x256xf32>
    tpu.vector_store %arg5[%c0_27, %c0_28, %c0_29, %c0_30], %98 {strides = array<i32>} : memref<1x14x16x256xf32, #tpu.memory_space<vmem>>, vector<1x14x16x256xf32>,
    return
  }
  func.func @transform_0(%arg0: i32) -> (i32, i32, i32, i32) {
    %c0_i32 = arith.constant 0 : i32
    %c0_i32_0 = arith.constant 0 : i32
    %c0_i32_1 = arith.constant 0 : i32
    %c0_i32_2 = arith.constant 0 : i32
    %c0_i32_3 = arith.constant 0 : i32
    return %c0_i32, %c0_i32_0, %c0_i32_1, %c0_i32_2 : i32, i32, i32, i32
  }
  func.func @transform_1(%arg0: i32) -> (i32, i32) {
    %c0_i32 = arith.constant 0 : i32
    %c0_i32_0 = arith.constant 0 : i32
    %c0_i32_1 = arith.constant 0 : i32
    return %c0_i32, %c0_i32_0 : i32, i32
  }
  func.func @transform_2(%arg0: i32) -> (i32, i32, i32, i32) {
    %c0_i32 = arith.constant 0 : i32
    %c0_i32_0 = arith.constant 0 : i32
    %c0_i32_1 = arith.constant 0 : i32
    %c0_i32_2 = arith.constant 0 : i32
    %c0_i32_3 = arith.constant 0 : i32
    return %c0_i32, %c0_i32_0, %c0_i32_1, %c0_i32_2 : i32, i32, i32, i32
  }
  func.func @transform_3(%arg0: i32) -> (i32, i32, i32, i32) {
    %c0_i32 = arith.constant 0 : i32
    %c0_i32_0 = arith.constant 0 : i32
    %c0_i32_1 = arith.constant 0 : i32
    %c0_i32_2 = arith.constant 0 : i32
    %c0_i32_3 = arith.constant 0 : i32
    return %c0_i32, %c0_i32_0, %c0_i32_1, %c0_i32_2 : i32, i32, i32, i32
  }
  func.func @transform_4(%arg0: i32) -> (i32, i32, i32, i32) {
    %c0_i32 = arith.constant 0 : i32
    %c0_i32_0 = arith.constant 0 : i32
    %c0_i32_1 = arith.constant 0 : i32
    %c0_i32_2 = arith.constant 0 : i32
    %c0_i32_3 = arith.constant 0 : i32
    return %c0_i32, %c0_i32_0, %c0_i32_1, %c0_i32_2 : i32, i32, i32, i32
  }
}

</mosaic_0001>

<llo_original>
// kernel: dwconv_bn.1
$region0: #{dwconv_bn.1}
  #allocation0 [shape = 'u32[]', space=smem, size = 0x4, offset = 0x4, fixed_abs, tag = 'smem constant byte address 0x4 - core index']
  #allocation1 [shape = 'u32[144,128]{1,0:T(1,128)}', space=vmem, size = 0x12000, scoped, tag = 'internal scratch']
  %s0 = inlined_call_operand.vmem [shape: f32[1,16,16,256], index: 0, kind: input, shape index: {}]
  %s1 = inlined_call_operand.vmem [shape: f32[9,256], index: 1, kind: input, shape index: {}]
  %s2 = inlined_call_operand.vmem [shape: f32[1,1,1,256], index: 2, kind: input, shape index: {}]
  %s3 = inlined_call_operand.vmem [shape: f32[1,1,1,256], index: 3, kind: input, shape index: {}]
  %s4 = inlined_call_operand.vmem [shape: f32[1,14,16,256], index: 4, kind: output, shape index: {}]
  %s5 = sld [smem:[#allocation0]]
  $region26: #{dwconv_bn.1} parent=0
    _
  %s7 = ssub.s32 1, %s5
  %s8 = scalar_select 0, %s7, %s5
  // Predicated region
  $region2: #{dwconv_bn.1} parent=0 // pred_check
    _
  $region3: #{dwconv_bn.1} parent=0 // pred_check_branch
    %10 = sbr.rel (0) target = $region5
  $region4: #{dwconv_bn.1} parent=0 // pred_region
    _
  $region5: #{dwconv_bn.1} parent=0 // pred_fallthru
    _
  // Predicated region
  $region6: #{dwconv_bn.1} parent=0 // pred_check
    _
  $region7: #{dwconv_bn.1} parent=0 // pred_check_branch
    %12 = sbr.rel (0) target = $region9
  $region8: #{dwconv_bn.1} parent=0 // pred_region
    _
  $region9: #{dwconv_bn.1} parent=0 // pred_fallthru
    _
  // Predicated region
  $region10: #{dwconv_bn.1} parent=0 // pred_check
    _
  $region11: #{dwconv_bn.1} parent=0 // pred_check_branch
    %14 = sbr.rel (0) target = $region13
  $region12: #{dwconv_bn.1} parent=0 // pred_region
    _
  $region13: #{dwconv_bn.1} parent=0 // pred_fallthru
    _
  // Predicated region
  $region14: #{dwconv_bn.1} parent=0 // pred_check
    _
  $region15: #{dwconv_bn.1} parent=0 // pred_check_branch
    %16 = sbr.rel (0) target = $region17
  $region16: #{dwconv_bn.1} parent=0 // pred_region
    _
  $region17: #{dwconv_bn.1} parent=0 // pred_fallthru
    _
  %v17 = vld [vmem:[%s0] sm:$0xff]
  %v18 = vld [vmem:[%s0 + $0x8] sm:$0xff]
  %v19 = vld [vmem:[%s0 + $0x10] sm:$0xff]
  %v20 = vld [vmem:[%s0 + $0x18] sm:$0xff]
  %v21 = vld [vmem:[%s0 + $0x20] sm:$0xff]
  %v22 = vld [vmem:[%s0 + $0x28] sm:$0xff]
  %v23 = vld [vmem:[%s0 + $0x30] sm:$0xff]
  %v24 = vld [vmem:[%s0 + $0x38] sm:$0xff]
  %v25 = vld [vmem:[%s0 + $0x40] sm:$0xff]
  %v26 = vld [vmem:[%s0 + $0x48] sm:$0xff]
  %v27 = vld [vmem:[%s0 + $0x50] sm:$0xff]
  %v28 = vld [vmem:[%s0 + $0x58] sm:$0xff]
  %v29 = vld [vmem:[%s0 + $0x60] sm:$0xff]
  %v30 = vld [vmem:[%s0 + $0x68] sm:$0xff]
  %v31 = vld [vmem:[%s0 + $0x70] sm:$0xff]
  %v32 = vld [vmem:[%s0 + $0x78] sm:$0xff]
  %v33 = vld [vmem:[%s0 + $0x80] sm:$0xff]
  %v34 = vld [vmem:[%s0 + $0x88] sm:$0xff]
  %v35 = vld [vmem:[%s0 + $0x90] sm:$0xff]
  %v36 = vld [vmem:[%s0 + $0x98] sm:$0xff]
  %v37 = vld [vmem:[%s0 + $0xa0] sm:$0xff]
  %v38 = vld [vmem:[%s0 + $0xa8] sm:$0xff]
  %v39 = vld [vmem:[%s0 + $0xb0] sm:$0xff]
  %v40 = vld [vmem:[%s0 + $0xb8] sm:$0xff]
  %v41 = vld [vmem:[%s0 + $0xc0] sm:$0xff]
  %v42 = vld [vmem:[%s0 + $0xc8] sm:$0xff]
  %v43 = vld [vmem:[%s0 + $0xd0] sm:$0xff]
  %v44 = vld [vmem:[%s0 + $0xd8] sm:$0xff]
  %v45 = vld [vmem:[%s0 + $0xe0] sm:$0xff]
  %v46 = vld [vmem:[%s0 + $0xe8] sm:$0xff]
  %v47 = vld [vmem:[%s0 + $0xf0] sm:$0xff]
  %v48 = vld [vmem:[%s0 + $0xf8] sm:$0xff]
  %v49 = vld [vmem:[%s0 + $0x100] sm:$0xff]
  %v50 = vld [vmem:[%s0 + $0x108] sm:$0xff]
  %v51 = vld [vmem:[%s0 + $0x110] sm:$0xff]
  %v52 = vld [vmem:[%s0 + $0x118] sm:$0xff]
  %v53 = vld [vmem:[%s0 + $0x120] sm:$0xff]
  %v54 = vld [vmem:[%s0 + $0x128] sm:$0xff]
  %v55 = vld [vmem:[%s0 + $0x130] sm:$0xff]
  %v56 = vld [vmem:[%s0 + $0x138] sm:$0xff]
  %v57 = vld [vmem:[%s0 + $0x140] sm:$0xff]
  %v58 = vld [vmem:[%s0 + $0x148] sm:$0xff]
  %v59 = vld [vmem:[%s0 + $0x150] sm:$0xff]
  %v60 = vld [vmem:[%s0 + $0x158] sm:$0xff]
  %v61 = vld [vmem:[%s0 + $0x160] sm:$0xff]
  %v62 = vld [vmem:[%s0 + $0x168] sm:$0xff]
  %v63 = vld [vmem:[%s0 + $0x170] sm:$0xff]
  %v64 = vld [vmem:[%s0 + $0x178] sm:$0xff]
  %v65 = vld [vmem:[%s0 + $0x180] sm:$0xff]
  %v66 = vld [vmem:[%s0 + $0x188] sm:$0xff]
  %v67 = vld [vmem:[%s0 + $0x190] sm:$0xff]
  %v68 = vld [vmem:[%s0 + $0x198] sm:$0xff]
  %v69 = vld [vmem:[%s0 + $0x1a0] sm:$0xff]
  %v70 = vld [vmem:[%s0 + $0x1a8] sm:$0xff]
  %v71 = vld [vmem:[%s0 + $0x1b0] sm:$0xff]
  %v72 = vld [vmem:[%s0 + $0x1b8] sm:$0xff]
  %v73 = vld [vmem:[%s0 + $0x1c0] sm:$0xff]
  %v74 = vld [vmem:[%s0 + $0x1c8] sm:$0xff]
  %v75 = vld [vmem:[%s0 + $0x1d0] sm:$0xff]
  %v76 = vld [vmem:[%s0 + $0x1d8] sm:$0xff]
  %v77 = vld [vmem:[%s0 + $0x1e0] sm:$0xff]
  %v78 = vld [vmem:[%s0 + $0x1e8] sm:$0xff]
  %v79 = vld [vmem:[%s0 + $0x1f0] sm:$0xff]
  %v80 = vld [vmem:[%s0 + $0x1f8] sm:$0xff]
  %v81 = vrot.slane %v17, 1
  %v82 = vrot.slane %v18, 1
  %v83 = vrot.slane %v21, 1
  %v84 = vrot.slane %v22, 1
  %v85 = vrot.slane %v25, 1
  %v86 = vrot.slane %v26, 1
  %v87 = vrot.slane %v29, 1
  %v88 = vrot.slane %v30, 1
  %v89 = vrot.slane %v33, 1
  %v90 = vrot.slane %v34, 1
  %v91 = vrot.slane %v37, 1
  %v92 = vrot.slane %v38, 1
  %v93 = vrot.slane %v41, 1
  %v94 = vrot.slane %v42, 1
  %v95 = vrot.slane %v45, 1
  %v96 = vrot.slane %v46, 1
  %v97 = vrot.slane %v49, 1
  %v98 = vrot.slane %v50, 1
  %v99 = vrot.slane %v53, 1
  %v100 = vrot.slane %v54, 1
  %v101 = vrot.slane %v57, 1
  %v102 = vrot.slane %v58, 1
  %v103 = vrot.slane %v61, 1
  %v104 = vrot.slane %v62, 1
  %v105 = vrot.slane %v65, 1
  %v106 = vrot.slane %v66, 1
  %v107 = vrot.slane %v69, 1
  %v108 = vrot.slane %v70, 1
  %v109 = vrot.slane %v73, 1
  %v110 = vrot.slane %v74, 1
  %v111 = vrot.slane %v77, 1
  %v112 = vrot.slane %v78, 1
  %v113 = vrot.slane %v19, 1
  %v114 = vrot.slane %v20, 1
  %v115 = vrot.slane %v23, 1
  %v116 = vrot.slane %v24, 1
  %v117 = vrot.slane %v27, 1
  %v118 = vrot.slane %v28, 1
  %v119 = vrot.slane %v31, 1
  %v120 = vrot.slane %v32, 1
  %v121 = vrot.slane %v35, 1
  %v122 = vrot.slane %v36, 1
  %v123 = vrot.slane %v39, 1
  %v124 = vrot.slane %v40, 1
  %v125 = vrot.slane %v43, 1
  %v126 = vrot.slane %v44, 1
  %v127 = vrot.slane %v47, 1
  %v128 = vrot.slane %v48, 1
  %v129 = vrot.slane %v51, 1
  %v130 = vrot.slane %v52, 1
  %v131 = vrot.slane %v55, 1
  %v132 = vrot.slane %v56, 1
  %v133 = vrot.slane %v59, 1
  %v134 = vrot.slane %v60, 1
  %v135 = vrot.slane %v63, 1
  %v136 = vrot.slane %v64, 1
  %v137 = vrot.slane %v67, 1
  %v138 = vrot.slane %v68, 1
  %v139 = vrot.slane %v71, 1
  %v140 = vrot.slane %v72, 1
  %v141 = vrot.slane %v75, 1
  %v142 = vrot.slane %v76, 1
  %v143 = vrot.slane %v79, 1
  %v144 = vrot.slane %v80, 1
  %v145 = vlaneseq
  %v146 = vshrl.u32 %v145, 7
  %vm147 = vcmp.lt.s32.totalorder %v146, 7
  %v148 = vsel %vm147, %v81, %v113
  %v149 = vsel %vm147, %v82, %v114
  %v150 = vsel %vm147, %v83, %v115
  %v151 = vsel %vm147, %v84, %v116
  %v152 = vsel %vm147, %v85, %v117
  %v153 = vsel %vm147, %v86, %v118
  %v154 = vsel %vm147, %v87, %v119
  %v155 = vsel %vm147, %v88, %v120
  %v156 = vsel %vm147, %v89, %v121
  %v157 = vsel %vm147, %v90, %v122
  %v158 = vsel %vm147, %v91, %v123
  %v159 = vsel %vm147, %v92, %v124
  %v160 = vsel %vm147, %v93, %v125
  %v161 = vsel %vm147, %v94, %v126
  %v162 = vsel %vm147, %v95, %v127
  %v163 = vsel %vm147, %v96, %v128
  %v164 = vsel %vm147, %v97, %v129
  %v165 = vsel %vm147, %v98, %v130
  %v166 = vsel %vm147, %v99, %v131
  %v167 = vsel %vm147, %v100, %v132
  %v168 = vsel %vm147, %v101, %v133
  %v169 = vsel %vm147, %v102, %v134
  %v170 = vsel %vm147, %v103, %v135
  %v171 = vsel %vm147, %v104, %v136
  %v172 = vsel %vm147, %v105, %v137
  %v173 = vsel %vm147, %v106, %v138
  %v174 = vsel %vm147, %v107, %v139
  %v175 = vsel %vm147, %v108, %v140
  %v176 = vsel %vm147, %v109, %v141
  %v177 = vsel %vm147, %v110, %v142
  %v178 = vsel %vm147, %v111, %v143
  %v179 = vsel %vm147, %v112, %v144
  %v180 = vsel %vm147, %v113, %v81
  %v181 = vsel %vm147, %v114, %v82
  %v182 = vsel %vm147, %v115, %v83
  %v183 = vsel %vm147, %v116, %v84
  %v184 = vsel %vm147, %v117, %v85
  %v185 = vsel %vm147, %v118, %v86
  %v186 = vsel %vm147, %v119, %v87
  %v187 = vsel %vm147, %v120, %v88
  %v188 = vsel %vm147, %v121, %v89
  %v189 = vsel %vm147, %v122, %v90
  %v190 = vsel %vm147, %v123, %v91
  %v191 = vsel %vm147, %v124, %v92
  %v192 = vsel %vm147, %v125, %v93
  %v193 = vsel %vm147, %v126, %v94
  %v194 = vsel %vm147, %v127, %v95
  %v195 = vsel %vm147, %v128, %v96
  %v196 = vsel %vm147, %v129, %v97
  %v197 = vsel %vm147, %v130, %v98
  %v198 = vsel %vm147, %v131, %v99
  %v199 = vsel %vm147, %v132, %v100
  %v200 = vsel %vm147, %v133, %v101
  %v201 = vsel %vm147, %v134, %v102
  %v202 = vsel %vm147, %v135, %v103
  %v203 = vsel %vm147, %v136, %v104
  %v204 = vsel %vm147, %v137, %v105
  %v205 = vsel %vm147, %v138, %v106
  %v206 = vsel %vm147, %v139, %v107
  %v207 = vsel %vm147, %v140, %v108
  %v208 = vsel %vm147, %v141, %v109
  %v209 = vsel %vm147, %v142, %v110
  %v210 = vsel %vm147, %v143, %v111
  %v211 = vsel %vm147, %v144, %v112
  %v212 = vrot.slane %v17, 2
  %v213 = vrot.slane %v18, 2
  %v214 = vrot.slane %v21, 2
  %v215 = vrot.slane %v22, 2
  %v216 = vrot.slane %v25, 2
  %v217 = vrot.slane %v26, 2
  %v218 = vrot.slane %v29, 2
  %v219 = vrot.slane %v30, 2
  %v220 = vrot.slane %v33, 2
  %v221 = vrot.slane %v34, 2
  %v222 = vrot.slane %v37, 2
  %v223 = vrot.slane %v38, 2
  %v224 = vrot.slane %v41, 2
  %v225 = vrot.slane %v42, 2
  %v226 = vrot.slane %v45, 2
  %v227 = vrot.slane %v46, 2
  %v228 = vrot.slane %v49, 2
  %v229 = vrot.slane %v50, 2
  %v230 = vrot.slane %v53, 2
  %v231 = vrot.slane %v54, 2
  %v232 = vrot.slane %v57, 2
  %v233 = vrot.slane %v58, 2
  %v234 = vrot.slane %v61, 2
  %v235 = vrot.slane %v62, 2
  %v236 = vrot.slane %v65, 2
  %v237 = vrot.slane %v66, 2
  %v238 = vrot.slane %v69, 2
  %v239 = vrot.slane %v70, 2
  %v240 = vrot.slane %v73, 2
  %v241 = vrot.slane %v74, 2
  %v242 = vrot.slane %v77, 2
  %v243 = vrot.slane %v78, 2
  %v244 = vrot.slane %v19, 2
  %v245 = vrot.slane %v20, 2
  %v246 = vrot.slane %v23, 2
  %v247 = vrot.slane %v24, 2
  %v248 = vrot.slane %v27, 2
  %v249 = vrot.slane %v28, 2
  %v250 = vrot.slane %v31, 2
  %v251 = vrot.slane %v32, 2
  %v252 = vrot.slane %v35, 2
  %v253 = vrot.slane %v36, 2
  %v254 = vrot.slane %v39, 2
  %v255 = vrot.slane %v40, 2
  %v256 = vrot.slane %v43, 2
  %v257 = vrot.slane %v44, 2
  %v258 = vrot.slane %v47, 2
  %v259 = vrot.slane %v48, 2
  %v260 = vrot.slane %v51, 2
  %v261 = vrot.slane %v52, 2
  %v262 = vrot.slane %v55, 2
  %v263 = vrot.slane %v56, 2
  %v264 = vrot.slane %v59, 2
  %v265 = vrot.slane %v60, 2
  %v266 = vrot.slane %v63, 2
  %v267 = vrot.slane %v64, 2
  %v268 = vrot.slane %v67, 2
  %v269 = vrot.slane %v68, 2
  %v270 = vrot.slane %v71, 2
  %v271 = vrot.slane %v72, 2
  %v272 = vrot.slane %v75, 2
  %v273 = vrot.slane %v76, 2
  %v274 = vrot.slane %v79, 2
  %v275 = vrot.slane %v80, 2
  %vm276 = vcmp.lt.s32.totalorder %v146, 6
  %v277 = vsel %vm276, %v212, %v244
  %v278 = vsel %vm276, %v213, %v245
  %v279 = vsel %vm276, %v214, %v246
  %v280 = vsel %vm276, %v215, %v247
  %v281 = vsel %vm276, %v216, %v248
  %v282 = vsel %vm276, %v217, %v249
  %v283 = vsel %vm276, %v218, %v250
  %v284 = vsel %vm276, %v219, %v251
  %v285 = vsel %vm276, %v220, %v252
  %v286 = vsel %vm276, %v221, %v253
  %v287 = vsel %vm276, %v222, %v254
  %v288 = vsel %vm276, %v223, %v255
  %v289 = vsel %vm276, %v224, %v256
  %v290 = vsel %vm276, %v225, %v257
  %v291 = vsel %vm276, %v226, %v258
  %v292 = vsel %vm276, %v227, %v259
  %v293 = vsel %vm276, %v228, %v260
  %v294 = vsel %vm276, %v229, %v261
  %v295 = vsel %vm276, %v230, %v262
  %v296 = vsel %vm276, %v231, %v263
  %v297 = vsel %vm276, %v232, %v264
  %v298 = vsel %vm276, %v233, %v265
  %v299 = vsel %vm276, %v234, %v266
  %v300 = vsel %vm276, %v235, %v267
  %v301 = vsel %vm276, %v236, %v268
  %v302 = vsel %vm276, %v237, %v269
  %v303 = vsel %vm276, %v238, %v270
  %v304 = vsel %vm276, %v239, %v271
  %v305 = vsel %vm276, %v240, %v272
  %v306 = vsel %vm276, %v241, %v273
  %v307 = vsel %vm276, %v242, %v274
  %v308 = vsel %vm276, %v243, %v275
  %v309 = vsel %vm276, %v244, %v212
  %v310 = vsel %vm276, %v245, %v213
  %v311 = vsel %vm276, %v246, %v214
  %v312 = vsel %vm276, %v247, %v215
  %v313 = vsel %vm276, %v248, %v216
  %v314 = vsel %vm276, %v249, %v217
  %v315 = vsel %vm276, %v250, %v218
  %v316 = vsel %vm276, %v251, %v219
  %v317 = vsel %vm276, %v252, %v220
  %v318 = vsel %vm276, %v253, %v221
  %v319 = vsel %vm276, %v254, %v222
  %v320 = vsel %vm276, %v255, %v223
  %v321 = vsel %vm276, %v256, %v224
  %v322 = vsel %vm276, %v257, %v225
  %v323 = vsel %vm276, %v258, %v226
  %v324 = vsel %vm276, %v259, %v227
  %v325 = vsel %vm276, %v260, %v228
  %v326 = vsel %vm276, %v261, %v229
  %v327 = vsel %vm276, %v262, %v230
  %v328 = vsel %vm276, %v263, %v231
  %v329 = vsel %vm276, %v264, %v232
  %v330 = vsel %vm276, %v265, %v233
  %v331 = vsel %vm276, %v266, %v234
  %v332 = vsel %vm276, %v267, %v235
  %v333 = vsel %vm276, %v268, %v236
  %v334 = vsel %vm276, %v269, %v237
  %v335 = vsel %vm276, %v270, %v238
  %v336 = vsel %vm276, %v271, %v239
  %v337 = vsel %vm276, %v272, %v240
  %v338 = vsel %vm276, %v273, %v241
  %v339 = vsel %vm276, %v274, %v242
  %v340 = vsel %vm276, %v275, %v243
  %v341 = vld [vmem:[%s1] ss:$8 sm:$0x3]
  %v343 = vlaneseq
  %v344 = vshrl.u32 %v343, 7
  %v345 = vsub.s32 0, %v344
  %v346 = vrot.slane %v341, %v345
  %v347 = vlaneseq
  %v348 = vshrl.u32 %v347, 7
  %v349 = vsub.s32 1, %v348
  %v350 = vrot.slane %v341, %v349
  %v353 = vmul.f32 %v17, %v346
  %v354 = vmul.f32 %v18, %v350
  %v355 = vmul.f32 %v19, %v346
  %v356 = vmul.f32 %v20, %v350
  %v357 = vmul.f32 %v21, %v346
  %v358 = vmul.f32 %v22, %v350
  %v359 = vmul.f32 %v23, %v346
  %v360 = vmul.f32 %v24, %v350
  %v361 = vmul.f32 %v25, %v346
  %v362 = vmul.f32 %v26, %v350
  %v363 = vmul.f32 %v27, %v346
  %v364 = vmul.f32 %v28, %v350
  %v365 = vmul.f32 %v29, %v346
  %v366 = vmul.f32 %v30, %v350
  %v367 = vmul.f32 %v31, %v346
  %v368 = vmul.f32 %v32, %v350
  %v369 = vmul.f32 %v33, %v346
  %v370 = vmul.f32 %v34, %v350
  %v371 = vmul.f32 %v35, %v346
  %v372 = vmul.f32 %v36, %v350
  %v373 = vmul.f32 %v37, %v346
  %v374 = vmul.f32 %v38, %v350
  %v375 = vmul.f32 %v39, %v346
  %v376 = vmul.f32 %v40, %v350
  %v377 = vmul.f32 %v41, %v346
  %v378 = vmul.f32 %v42, %v350
  %v379 = vmul.f32 %v43, %v346
  %v380 = vmul.f32 %v44, %v350
  %v381 = vmul.f32 %v45, %v346
  %v382 = vmul.f32 %v46, %v350
  %v383 = vmul.f32 %v47, %v346
  %v384 = vmul.f32 %v48, %v350
  %v385 = vmul.f32 %v49, %v346
  %v386 = vmul.f32 %v50, %v350
  %v387 = vmul.f32 %v51, %v346
  %v388 = vmul.f32 %v52, %v350
  %v389 = vmul.f32 %v53, %v346
  %v390 = vmul.f32 %v54, %v350
  %v391 = vmul.f32 %v55, %v346
  %v392 = vmul.f32 %v56, %v350
  %v393 = vmul.f32 %v57, %v346
  %v394 = vmul.f32 %v58, %v350
  %v395 = vmul.f32 %v59, %v346
  %v396 = vmul.f32 %v60, %v350
  %v397 = vmul.f32 %v61, %v346
  %v398 = vmul.f32 %v62, %v350
  %v399 = vmul.f32 %v63, %v346
  %v400 = vmul.f32 %v64, %v350
  %v401 = vmul.f32 %v65, %v346
  %v402 = vmul.f32 %v66, %v350
  %v403 = vmul.f32 %v67, %v346
  %v404 = vmul.f32 %v68, %v350
  %v405 = vmul.f32 %v69, %v346
  %v406 = vmul.f32 %v70, %v350
  %v407 = vmul.f32 %v71, %v346
  %v408 = vmul.f32 %v72, %v350
  %v409 = vadd.f32 %v353, 0.0
  %v410 = vadd.f32 %v354, 0.0
  %v411 = vadd.f32 %v355, 0.0
  %v412 = vadd.f32 %v356, 0.0
  %v413 = vadd.f32 %v357, 0.0
  %v414 = vadd.f32 %v358, 0.0
  %v415 = vadd.f32 %v359, 0.0
  %v416 = vadd.f32 %v360, 0.0
  %v417 = vadd.f32 %v361, 0.0
  %v418 = vadd.f32 %v362, 0.0
  %v419 = vadd.f32 %v363, 0.0
  %v420 = vadd.f32 %v364, 0.0
  %v421 = vadd.f32 %v365, 0.0
  %v422 = vadd.f32 %v366, 0.0
  %v423 = vadd.f32 %v367, 0.0
  %v424 = vadd.f32 %v368, 0.0
  %v425 = vadd.f32 %v369, 0.0
  %v426 = vadd.f32 %v370, 0.0
  %v427 = vadd.f32 %v371, 0.0
  %v428 = vadd.f32 %v372, 0.0
  %v429 = vadd.f32 %v373, 0.0
  %v430 = vadd.f32 %v374, 0.0
  %v431 = vadd.f32 %v375, 0.0
  %v432 = vadd.f32 %v376, 0.0
  %v433 = vadd.f32 %v377, 0.0
  %v434 = vadd.f32 %v378, 0.0
  %v435 = vadd.f32 %v379, 0.0
  %v436 = vadd.f32 %v380, 0.0
  %v437 = vadd.f32 %v381, 0.0
  %v438 = vadd.f32 %v382, 0.0
  %v439 = vadd.f32 %v383, 0.0
  %v440 = vadd.f32 %v384, 0.0
  %v441 = vadd.f32 %v385, 0.0
  %v442 = vadd.f32 %v386, 0.0
  %v443 = vadd.f32 %v387, 0.0
  %v444 = vadd.f32 %v388, 0.0
  %v445 = vadd.f32 %v389, 0.0
  %v446 = vadd.f32 %v390, 0.0
  %v447 = vadd.f32 %v391, 0.0
  %v448 = vadd.f32 %v392, 0.0
  %v449 = vadd.f32 %v393, 0.0
  %v450 = vadd.f32 %v394, 0.0
  %v451 = vadd.f32 %v395, 0.0
  %v452 = vadd.f32 %v396, 0.0
  %v453 = vadd.f32 %v397, 0.0
  %v454 = vadd.f32 %v398, 0.0
  %v455 = vadd.f32 %v399, 0.0
  %v456 = vadd.f32 %v400, 0.0
  %v457 = vadd.f32 %v401, 0.0
  %v458 = vadd.f32 %v402, 0.0
  %v459 = vadd.f32 %v403, 0.0
  %v460 = vadd.f32 %v404, 0.0
  %v461 = vadd.f32 %v405, 0.0
  %v462 = vadd.f32 %v406, 0.0
  %v463 = vadd.f32 %v407, 0.0
  %v464 = vadd.f32 %v408, 0.0
  %s465 = scalar_lea.vmem %s1, 1
  %v466 = vld [vmem:[%s465] ss:$8 sm:$0x3]
  %v468 = vlaneseq
  %v469 = vshrl.u32 %v468, 7
  %v470 = vsub.s32 0, %v469
  %v471 = vrot.slane %v466, %v470
  %v472 = vlaneseq
  %v473 = vshrl.u32 %v472, 7
  %v474 = vsub.s32 1, %v473
  %v475 = vrot.slane %v466, %v474
  %v478 = vmul.f32 %v148, %v471
  %v479 = vmul.f32 %v149, %v475
  %v480 = vmul.f32 %v180, %v471
  %v481 = vmul.f32 %v181, %v475
  %v482 = vmul.f32 %v150, %v471
  %v483 = vmul.f32 %v151, %v475
  %v484 = vmul.f32 %v182, %v471
  %v485 = vmul.f32 %v183, %v475
  %v486 = vmul.f32 %v152, %v471
  %v487 = vmul.f32 %v153, %v475
  %v488 = vmul.f32 %v184, %v471
  %v489 = vmul.f32 %v185, %v475
  %v490 = vmul.f32 %v154, %v471
  %v491 = vmul.f32 %v155, %v475
  %v492 = vmul.f32 %v186, %v471
  %v493 = vmul.f32 %v187, %v475
  %v494 = vmul.f32 %v156, %v471
  %v495 = vmul.f32 %v157, %v475
  %v496 = vmul.f32 %v188, %v471
  %v497 = vmul.f32 %v189, %v475
  %v498 = vmul.f32 %v158, %v471
  %v499 = vmul.f32 %v159, %v475
  %v500 = vmul.f32 %v190, %v471
  %v501 = vmul.f32 %v191, %v475
  %v502 = vmul.f32 %v160, %v471
  %v503 = vmul.f32 %v161, %v475
  %v504 = vmul.f32 %v192, %v471
  %v505 = vmul.f32 %v193, %v475
  %v506 = vmul.f32 %v162, %v471
  %v507 = vmul.f32 %v163, %v475
  %v508 = vmul.f32 %v194, %v471
  %v509 = vmul.f32 %v195, %v475
  %v510 = vmul.f32 %v164, %v471
  %v511 = vmul.f32 %v165, %v475
  %v512 = vmul.f32 %v196, %v471
  %v513 = vmul.f32 %v197, %v475
  %v514 = vmul.f32 %v166, %v471
  %v515 = vmul.f32 %v167, %v475
  %v516 = vmul.f32 %v198, %v471
  %v517 = vmul.f32 %v199, %v475
  %v518 = vmul.f32 %v168, %v471
  %v519 = vmul.f32 %v169, %v475
  %v520 = vmul.f32 %v200, %v471
  %v521 = vmul.f32 %v201, %v475
  %v522 = vmul.f32 %v170, %v471
  %v523 = vmul.f32 %v171, %v475
  %v524 = vmul.f32 %v202, %v471
  %v525 = vmul.f32 %v203, %v475
  %v526 = vmul.f32 %v172, %v471
  %v527 = vmul.f32 %v173, %v475
  %v528 = vmul.f32 %v204, %v471
  %v529 = vmul.f32 %v205, %v475
  %v530 = vmul.f32 %v174, %v471
  %v531 = vmul.f32 %v175, %v475
  %v532 = vmul.f32 %v206, %v471
  %v533 = vmul.f32 %v207, %v475
  %v534 = vadd.f32 %v409, %v478
  %v535 = vadd.f32 %v410, %v479
  %v536 = vadd.f32 %v411, %v480
  %v537 = vadd.f32 %v412, %v481
  %v538 = vadd.f32 %v413, %v482
  %v539 = vadd.f32 %v414, %v483
  %v540 = vadd.f32 %v415, %v484
  %v541 = vadd.f32 %v416, %v485
  %v542 = vadd.f32 %v417, %v486
  %v543 = vadd.f32 %v418, %v487
  %v544 = vadd.f32 %v419, %v488
  %v545 = vadd.f32 %v420, %v489
  %v546 = vadd.f32 %v421, %v490
  %v547 = vadd.f32 %v422, %v491
  %v548 = vadd.f32 %v423, %v492
  %v549 = vadd.f32 %v424, %v493
  %v550 = vadd.f32 %v425, %v494
  %v551 = vadd.f32 %v426, %v495
  %v552 = vadd.f32 %v427, %v496
  %v553 = vadd.f32 %v428, %v497
  %v554 = vadd.f32 %v429, %v498
  %v555 = vadd.f32 %v430, %v499
  %v556 = vadd.f32 %v431, %v500
  %v557 = vadd.f32 %v432, %v501
  %v558 = vadd.f32 %v433, %v502
  %v559 = vadd.f32 %v434, %v503
  %v560 = vadd.f32 %v435, %v504
  %v561 = vadd.f32 %v436, %v505
  %v562 = vadd.f32 %v437, %v506
  %v563 = vadd.f32 %v438, %v507
  %v564 = vadd.f32 %v439, %v508
  %v565 = vadd.f32 %v440, %v509
  %v566 = vadd.f32 %v441, %v510
  %v567 = vadd.f32 %v442, %v511
  %v568 = vadd.f32 %v443, %v512
  %v569 = vadd.f32 %v444, %v513
  %v570 = vadd.f32 %v445, %v514
  %v571 = vadd.f32 %v446, %v515
  %v572 = vadd.f32 %v447, %v516
  %v573 = vadd.f32 %v448, %v517
  %v574 = vadd.f32 %v449, %v518
  %v575 = vadd.f32 %v450, %v519
  %v576 = vadd.f32 %v451, %v520
  %v577 = vadd.f32 %v452, %v521
  %v578 = vadd.f32 %v453, %v522
  %v579 = vadd.f32 %v454, %v523
  %v580 = vadd.f32 %v455, %v524
  %v581 = vadd.f32 %v456, %v525
  %v582 = vadd.f32 %v457, %v526
  %v583 = vadd.f32 %v458, %v527
  %v584 = vadd.f32 %v459, %v528
  %v585 = vadd.f32 %v460, %v529
  %v586 = vadd.f32 %v461, %v530
  %v587 = vadd.f32 %v462, %v531
  %v588 = vadd.f32 %v463, %v532
  %v589 = vadd.f32 %v464, %v533
  %s590 = scalar_lea.vmem %s1, 2
  %v591 = vld [vmem:[%s590] ss:$8 sm:$0x3]
  %v593 = vlaneseq
  %v594 = vshrl.u32 %v593, 7
  %v595 = vsub.s32 0, %v594
  %v596 = vrot.slane %v591, %v595
  %v597 = vlaneseq
  %v598 = vshrl.u32 %v597, 7
  %v599 = vsub.s32 1, %v598
  %v600 = vrot.slane %v591, %v599
  %v603 = vmul.f32 %v277, %v596
  %v604 = vmul.f32 %v278, %v600
  %v605 = vmul.f32 %v309, %v596
  %v606 = vmul.f32 %v310, %v600
  %v607 = vmul.f32 %v279, %v596
  %v608 = vmul.f32 %v280, %v600
  %v609 = vmul.f32 %v311, %v596
  %v610 = vmul.f32 %v312, %v600
  %v611 = vmul.f32 %v281, %v596
  %v612 = vmul.f32 %v282, %v600
  %v613 = vmul.f32 %v313, %v596
  %v614 = vmul.f32 %v314, %v600
  %v615 = vmul.f32 %v283, %v596
  %v616 = vmul.f32 %v284, %v600
  %v617 = vmul.f32 %v315, %v596
  %v618 = vmul.f32 %v316, %v600
  %v619 = vmul.f32 %v285, %v596
  %v620 = vmul.f32 %v286, %v600
  %v621 = vmul.f32 %v317, %v596
  %v622 = vmul.f32 %v318, %v600
  %v623 = vmul.f32 %v287, %v596
  %v624 = vmul.f32 %v288, %v600
  %v625 = vmul.f32 %v319, %v596
  %v626 = vmul.f32 %v320, %v600
  %v627 = vmul.f32 %v289, %v596
  %v628 = vmul.f32 %v290, %v600
  %v629 = vmul.f32 %v321, %v596
  %v630 = vmul.f32 %v322, %v600
  %v631 = vmul.f32 %v291, %v596
  %v632 = vmul.f32 %v292, %v600
  %v633 = vmul.f32 %v323, %v596
  %v634 = vmul.f32 %v324, %v600
  %v635 = vmul.f32 %v293, %v596
  %v636 = vmul.f32 %v294, %v600
  %v637 = vmul.f32 %v325, %v596
  %v638 = vmul.f32 %v326, %v600
  %v639 = vmul.f32 %v295, %v596
  %v640 = vmul.f32 %v296, %v600
  %v641 = vmul.f32 %v327, %v596
  %v642 = vmul.f32 %v328, %v600
  %v643 = vmul.f32 %v297, %v596
  %v644 = vmul.f32 %v298, %v600
  %v645 = vmul.f32 %v329, %v596
  %v646 = vmul.f32 %v330, %v600
  %v647 = vmul.f32 %v299, %v596
  %v648 = vmul.f32 %v300, %v600
  %v649 = vmul.f32 %v331, %v596
  %v650 = vmul.f32 %v332, %v600
  %v651 = vmul.f32 %v301, %v596
  %v652 = vmul.f32 %v302, %v600
  %v653 = vmul.f32 %v333, %v596
  %v654 = vmul.f32 %v334, %v600
  %v655 = vmul.f32 %v303, %v596
  %v656 = vmul.f32 %v304, %v600
  %v657 = vmul.f32 %v335, %v596
  %v658 = vmul.f32 %v336, %v600
  %v659 = vadd.f32 %v534, %v603
  %v660 = vadd.f32 %v535, %v604
  %v661 = vadd.f32 %v536, %v605
  %v662 = vadd.f32 %v537, %v606
  %v663 = vadd.f32 %v538, %v607
  %v664 = vadd.f32 %v539, %v608
  %v665 = vadd.f32 %v540, %v609
  %v666 = vadd.f32 %v541, %v610
  %v667 = vadd.f32 %v542, %v611
  %v668 = vadd.f32 %v543, %v612
  %v669 = vadd.f32 %v544, %v613
  %v670 = vadd.f32 %v545, %v614
  %v671 = vadd.f32 %v546, %v615
  %v672 = vadd.f32 %v547, %v616
  %v673 = vadd.f32 %v548, %v617
  %v674 = vadd.f32 %v549, %v618
  %v675 = vadd.f32 %v550, %v619
  %v676 = vadd.f32 %v551, %v620
  %v677 = vadd.f32 %v552, %v621
  %v678 = vadd.f32 %v553, %v622
  %v679 = vadd.f32 %v554, %v623
  %v680 = vadd.f32 %v555, %v624
  %v681 = vadd.f32 %v556, %v625
  %v682 = vadd.f32 %v557, %v626
  %v683 = vadd.f32 %v558, %v627
  %v684 = vadd.f32 %v559, %v628
  %v685 = vadd.f32 %v560, %v629
  %v686 = vadd.f32 %v561, %v630
  %v687 = vadd.f32 %v562, %v631
  %v688 = vadd.f32 %v563, %v632
  %v689 = vadd.f32 %v564, %v633
  %v690 = vadd.f32 %v565, %v634
  %v691 = vadd.f32 %v566, %v635
  %v692 = vadd.f32 %v567, %v636
  %v693 = vadd.f32 %v568, %v637
  %v694 = vadd.f32 %v569, %v638
  %v695 = vadd.f32 %v570, %v639
  %v696 = vadd.f32 %v571, %v640
  %v697 = vadd.f32 %v572, %v641
  %v698 = vadd.f32 %v573, %v642
  %v699 = vadd.f32 %v574, %v643
  %v700 = vadd.f32 %v575, %v644
  %v701 = vadd.f32 %v576, %v645
  %v702 = vadd.f32 %v577, %v646
  %v703 = vadd.f32 %v578, %v647
  %v704 = vadd.f32 %v579, %v648
  %v705 = vadd.f32 %v580, %v649
  %v706 = vadd.f32 %v581, %v650
  %v707 = vadd.f32 %v582, %v651
  %v708 = vadd.f32 %v583, %v652
  %v709 = vadd.f32 %v584, %v653
  %v710 = vadd.f32 %v585, %v654
  %v711 = vadd.f32 %v586, %v655
  %v712 = vadd.f32 %v587, %v656
  %v713 = vadd.f32 %v588, %v657
  %v714 = vadd.f32 %v589, %v658
  %s715 = scalar_lea.vmem %s1, 3
  %v716 = vld [vmem:[%s715] ss:$8 sm:$0x3]
  %v718 = vlaneseq
  %v719 = vshrl.u32 %v718, 7
  %v720 = vsub.s32 0, %v719
  %v721 = vrot.slane %v716, %v720
  %v722 = vlaneseq
  %v723 = vshrl.u32 %v722, 7
  %v724 = vsub.s32 1, %v723
  %v725 = vrot.slane %v716, %v724
  %v728 = vmul.f32 %v21, %v721
  %v729 = vmul.f32 %v22, %v725
  %v730 = vmul.f32 %v23, %v721
  %v731 = vmul.f32 %v24, %v725
  %v732 = vmul.f32 %v25, %v721
  %v733 = vmul.f32 %v26, %v725
  %v734 = vmul.f32 %v27, %v721
  %v735 = vmul.f32 %v28, %v725
  %v736 = vmul.f32 %v29, %v721
  %v737 = vmul.f32 %v30, %v725
  %v738 = vmul.f32 %v31, %v721
  %v739 = vmul.f32 %v32, %v725
  %v740 = vmul.f32 %v33, %v721
  %v741 = vmul.f32 %v34, %v725
  %v742 = vmul.f32 %v35, %v721
  %v743 = vmul.f32 %v36, %v725
  %v744 = vmul.f32 %v37, %v721
  %v745 = vmul.f32 %v38, %v725
  %v746 = vmul.f32 %v39, %v721
  %v747 = vmul.f32 %v40, %v725
  %v748 = vmul.f32 %v41, %v721
  %v749 = vmul.f32 %v42, %v725
  %v750 = vmul.f32 %v43, %v721
  %v751 = vmul.f32 %v44, %v725
  %v752 = vmul.f32 %v45, %v721
  %v753 = vmul.f32 %v46, %v725
  %v754 = vmul.f32 %v47, %v721
  %v755 = vmul.f32 %v48, %v725
  %v756 = vmul.f32 %v49, %v721
  %v757 = vmul.f32 %v50, %v725
  %v758 = vmul.f32 %v51, %v721
  %v759 = vmul.f32 %v52, %v725
  %v760 = vmul.f32 %v53, %v721
  %v761 = vmul.f32 %v54, %v725
  %v762 = vmul.f32 %v55, %v721
  %v763 = vmul.f32 %v56, %v725
  %v764 = vmul.f32 %v57, %v721
  %v765 = vmul.f32 %v58, %v725
  %v766 = vmul.f32 %v59, %v721
  %v767 = vmul.f32 %v60, %v725
  %v768 = vmul.f32 %v61, %v721
  %v769 = vmul.f32 %v62, %v725
  %v770 = vmul.f32 %v63, %v721
  %v771 = vmul.f32 %v64, %v725
  %v772 = vmul.f32 %v65, %v721
  %v773 = vmul.f32 %v66, %v725
  %v774 = vmul.f32 %v67, %v721
  %v775 = vmul.f32 %v68, %v725
  %v776 = vmul.f32 %v69, %v721
  %v777 = vmul.f32 %v70, %v725
  %v778 = vmul.f32 %v71, %v721
  %v779 = vmul.f32 %v72, %v725
  %v780 = vmul.f32 %v73, %v721
  %v781 = vmul.f32 %v74, %v725
  %v782 = vmul.f32 %v75, %v721
  %v783 = vmul.f32 %v76, %v725
  %v784 = vadd.f32 %v659, %v728
  %v785 = vadd.f32 %v660, %v729
  %v786 = vadd.f32 %v661, %v730
  %v787 = vadd.f32 %v662, %v731
  %v788 = vadd.f32 %v663, %v732
  %v789 = vadd.f32 %v664, %v733
  %v790 = vadd.f32 %v665, %v734
  %v791 = vadd.f32 %v666, %v735
  %v792 = vadd.f32 %v667, %v736
  %v793 = vadd.f32 %v668, %v737
  %v794 = vadd.f32 %v669, %v738
  %v795 = vadd.f32 %v670, %v739
  %v796 = vadd.f32 %v671, %v740
  %v797 = vadd.f32 %v672, %v741
  %v798 = vadd.f32 %v673, %v742
  %v799 = vadd.f32 %v674, %v743
  %v800 = vadd.f32 %v675, %v744
  %v801 = vadd.f32 %v676, %v745
  %v802 = vadd.f32 %v677, %v746
  %v803 = vadd.f32 %v678, %v747
  %v804 = vadd.f32 %v679, %v748
  %v805 = vadd.f32 %v680, %v749
  %v806 = vadd.f32 %v681, %v750
  %v807 = vadd.f32 %v682, %v751
  %v808 = vadd.f32 %v683, %v752
  %v809 = vadd.f32 %v684, %v753
  %v810 = vadd.f32 %v685, %v754
  %v811 = vadd.f32 %v686, %v755
  %v812 = vadd.f32 %v687, %v756
  %v813 = vadd.f32 %v688, %v757
  %v814 = vadd.f32 %v689, %v758
  %v815 = vadd.f32 %v690, %v759
  %v816 = vadd.f32 %v691, %v760
  %v817 = vadd.f32 %v692, %v761
  %v818 = vadd.f32 %v693, %v762
  %v819 = vadd.f32 %v694, %v763
  %v820 = vadd.f32 %v695, %v764
  %v821 = vadd.f32 %v696, %v765
  %v822 = vadd.f32 %v697, %v766
  %v823 = vadd.f32 %v698, %v767
  %v824 = vadd.f32 %v699, %v768
  %v825 = vadd.f32 %v700, %v769
  %v826 = vadd.f32 %v701, %v770
  %v827 = vadd.f32 %v702, %v771
  %v828 = vadd.f32 %v703, %v772
  %v829 = vadd.f32 %v704, %v773
  %v830 = vadd.f32 %v705, %v774
  %v831 = vadd.f32 %v706, %v775
  %v832 = vadd.f32 %v707, %v776
  %v833 = vadd.f32 %v708, %v777
  %v834 = vadd.f32 %v709, %v778
  %v835 = vadd.f32 %v710, %v779
  %v836 = vadd.f32 %v711, %v780
  %v837 = vadd.f32 %v712, %v781
  %v838 = vadd.f32 %v713, %v782
  %v839 = vadd.f32 %v714, %v783
  %s840 = scalar_lea.vmem %s1, 4
  %v841 = vld [vmem:[%s840] ss:$8 sm:$0x3]
  %v843 = vlaneseq
  %v844 = vshrl.u32 %v843, 7
  %v845 = vsub.s32 0, %v844
  %v846 = vrot.slane %v841, %v845
  %v847 = vlaneseq
  %v848 = vshrl.u32 %v847, 7
  %v849 = vsub.s32 1, %v848
  %v850 = vrot.slane %v841, %v849
  %v853 = vmul.f32 %v150, %v846
  %v854 = vmul.f32 %v151, %v850
  %v855 = vmul.f32 %v182, %v846
  %v856 = vmul.f32 %v183, %v850
  %v857 = vmul.f32 %v152, %v846
  %v858 = vmul.f32 %v153, %v850
  %v859 = vmul.f32 %v184, %v846
  %v860 = vmul.f32 %v185, %v850
  %v861 = vmul.f32 %v154, %v846
  %v862 = vmul.f32 %v155, %v850
  %v863 = vmul.f32 %v186, %v846
  %v864 = vmul.f32 %v187, %v850
  %v865 = vmul.f32 %v156, %v846
  %v866 = vmul.f32 %v157, %v850
  %v867 = vmul.f32 %v188, %v846
  %v868 = vmul.f32 %v189, %v850
  %v869 = vmul.f32 %v158, %v846
  %v870 = vmul.f32 %v159, %v850
  %v871 = vmul.f32 %v190, %v846
  %v872 = vmul.f32 %v191, %v850
  %v873 = vmul.f32 %v160, %v846
  %v874 = vmul.f32 %v161, %v850
  %v875 = vmul.f32 %v192, %v846
  %v876 = vmul.f32 %v193, %v850
  %v877 = vmul.f32 %v162, %v846
  %v878 = vmul.f32 %v163, %v850
  %v879 = vmul.f32 %v194, %v846
  %v880 = vmul.f32 %v195, %v850
  %v881 = vmul.f32 %v164, %v846
  %v882 = vmul.f32 %v165, %v850
  %v883 = vmul.f32 %v196, %v846
  %v884 = vmul.f32 %v197, %v850
  %v885 = vmul.f32 %v166, %v846
  %v886 = vmul.f32 %v167, %v850
  %v887 = vmul.f32 %v198, %v846
  %v888 = vmul.f32 %v199, %v850
  %v889 = vmul.f32 %v168, %v846
  %v890 = vmul.f32 %v169, %v850
  %v891 = vmul.f32 %v200, %v846
  %v892 = vmul.f32 %v201, %v850
  %v893 = vmul.f32 %v170, %v846
  %v894 = vmul.f32 %v171, %v850
  %v895 = vmul.f32 %v202, %v846
  %v896 = vmul.f32 %v203, %v850
  %v897 = vmul.f32 %v172, %v846
  %v898 = vmul.f32 %v173, %v850
  %v899 = vmul.f32 %v204, %v846
  %v900 = vmul.f32 %v205, %v850
  %v901 = vmul.f32 %v174, %v846
  %v902 = vmul.f32 %v175, %v850
  %v903 = vmul.f32 %v206, %v846
  %v904 = vmul.f32 %v207, %v850
  %v905 = vmul.f32 %v176, %v846
  %v906 = vmul.f32 %v177, %v850
  %v907 = vmul.f32 %v208, %v846
  %v908 = vmul.f32 %v209, %v850
  %v909 = vadd.f32 %v784, %v853
  %v910 = vadd.f32 %v785, %v854
  %v911 = vadd.f32 %v786, %v855
  %v912 = vadd.f32 %v787, %v856
  %v913 = vadd.f32 %v788, %v857
  %v914 = vadd.f32 %v789, %v858
  %v915 = vadd.f32 %v790, %v859
  %v916 = vadd.f32 %v791, %v860
  %v917 = vadd.f32 %v792, %v861
  %v918 = vadd.f32 %v793, %v862
  %v919 = vadd.f32 %v794, %v863
  %v920 = vadd.f32 %v795, %v864
  %v921 = vadd.f32 %v796, %v865
  %v922 = vadd.f32 %v797, %v866
  %v923 = vadd.f32 %v798, %v867
  %v924 = vadd.f32 %v799, %v868
  %v925 = vadd.f32 %v800, %v869
  %v926 = vadd.f32 %v801, %v870
  %v927 = vadd.f32 %v802, %v871
  %v928 = vadd.f32 %v803, %v872
  %v929 = vadd.f32 %v804, %v873
  %v930 = vadd.f32 %v805, %v874
  %v931 = vadd.f32 %v806, %v875
  %v932 = vadd.f32 %v807, %v876
  %v933 = vadd.f32 %v808, %v877
  %v934 = vadd.f32 %v809, %v878
  %v935 = vadd.f32 %v810, %v879
  %v936 = vadd.f32 %v811, %v880
  %v937 = vadd.f32 %v812, %v881
  %v938 = vadd.f32 %v813, %v882
  %v939 = vadd.f32 %v814, %v883
  %v940 = vadd.f32 %v815, %v884
  %v941 = vadd.f32 %v816, %v885
  %v942 = vadd.f32 %v817, %v886
  %v943 = vadd.f32 %v818, %v887
  %v944 = vadd.f32 %v819, %v888
  %v945 = vadd.f32 %v820, %v889
  %v946 = vadd.f32 %v821, %v890
  %v947 = vadd.f32 %v822, %v891
  %v948 = vadd.f32 %v823, %v892
  %v949 = vadd.f32 %v824, %v893
  %v950 = vadd.f32 %v825, %v894
  %v951 = vadd.f32 %v826, %v895
  %v952 = vadd.f32 %v827, %v896
  %v953 = vadd.f32 %v828, %v897
  %v954 = vadd.f32 %v829, %v898
  %v955 = vadd.f32 %v830, %v899
  %v956 = vadd.f32 %v831, %v900
  %v957 = vadd.f32 %v832, %v901
  %v958 = vadd.f32 %v833, %v902
  %v959 = vadd.f32 %v834, %v903
  %v960 = vadd.f32 %v835, %v904
  %v961 = vadd.f32 %v836, %v905
  %v962 = vadd.f32 %v837, %v906
  %v963 = vadd.f32 %v838, %v907
  %v964 = vadd.f32 %v839, %v908
  %s965 = scalar_lea.vmem %s1, 5
  %v966 = vld [vmem:[%s965] ss:$8 sm:$0x3]
  %v968 = vlaneseq
  %v969 = vshrl.u32 %v968, 7
  %v970 = vsub.s32 0, %v969
  %v971 = vrot.slane %v966, %v970
  %v972 = vlaneseq
  %v973 = vshrl.u32 %v972, 7
  %v974 = vsub.s32 1, %v973
  %v975 = vrot.slane %v966, %v974
  %v978 = vmul.f32 %v279, %v971
  %v979 = vmul.f32 %v280, %v975
  %v980 = vmul.f32 %v311, %v971
  %v981 = vmul.f32 %v312, %v975
  %v982 = vmul.f32 %v281, %v971
  %v983 = vmul.f32 %v282, %v975
  %v984 = vmul.f32 %v313, %v971
  %v985 = vmul.f32 %v314, %v975
  %v986 = vmul.f32 %v283, %v971
  %v987 = vmul.f32 %v284, %v975
  %v988 = vmul.f32 %v315, %v971
  %v989 = vmul.f32 %v316, %v975
  %v990 = vmul.f32 %v285, %v971
  %v991 = vmul.f32 %v286, %v975
  %v992 = vmul.f32 %v317, %v971
  %v993 = vmul.f32 %v318, %v975
  %v994 = vmul.f32 %v287, %v971
  %v995 = vmul.f32 %v288, %v975
  %v996 = vmul.f32 %v319, %v971
  %v997 = vmul.f32 %v320, %v975
  %v998 = vmul.f32 %v289, %v971
  %v999 = vmul.f32 %v290, %v975
  %v1000 = vmul.f32 %v321, %v971
  %v1001 = vmul.f32 %v322, %v975
  %v1002 = vmul.f32 %v291, %v971
  %v1003 = vmul.f32 %v292, %v975
  %v1004 = vmul.f32 %v323, %v971
  %v1005 = vmul.f32 %v324, %v975
  %v1006 = vmul.f32 %v293, %v971
  %v1007 = vmul.f32 %v294, %v975
  %v1008 = vmul.f32 %v325, %v971
  %v1009 = vmul.f32 %v326, %v975
  %v1010 = vmul.f32 %v295, %v971
  %v1011 = vmul.f32 %v296, %v975
  %v1012 = vmul.f32 %v327, %v971
  %v1013 = vmul.f32 %v328, %v975
  %v1014 = vmul.f32 %v297, %v971
  %v1015 = vmul.f32 %v298, %v975
  %v1016 = vmul.f32 %v329, %v971
  %v1017 = vmul.f32 %v330, %v975
  %v1018 = vmul.f32 %v299, %v971
  %v1019 = vmul.f32 %v300, %v975
  %v1020 = vmul.f32 %v331, %v971
  %v1021 = vmul.f32 %v332, %v975
  %v1022 = vmul.f32 %v301, %v971
  %v1023 = vmul.f32 %v302, %v975
  %v1024 = vmul.f32 %v333, %v971
  %v1025 = vmul.f32 %v334, %v975
  %v1026 = vmul.f32 %v303, %v971
  %v1027 = vmul.f32 %v304, %v975
  %v1028 = vmul.f32 %v335, %v971
  %v1029 = vmul.f32 %v336, %v975
  %v1030 = vmul.f32 %v305, %v971
  %v1031 = vmul.f32 %v306, %v975
  %v1032 = vmul.f32 %v337, %v971
  %v1033 = vmul.f32 %v338, %v975
  %v1034 = vadd.f32 %v909, %v978
  %v1035 = vadd.f32 %v910, %v979
  %v1036 = vadd.f32 %v911, %v980
  %v1037 = vadd.f32 %v912, %v981
  %v1038 = vadd.f32 %v913, %v982
  %v1039 = vadd.f32 %v914, %v983
  %v1040 = vadd.f32 %v915, %v984
  %v1041 = vadd.f32 %v916, %v985
  %v1042 = vadd.f32 %v917, %v986
  %v1043 = vadd.f32 %v918, %v987
  %v1044 = vadd.f32 %v919, %v988
  %v1045 = vadd.f32 %v920, %v989
  %v1046 = vadd.f32 %v921, %v990
  %v1047 = vadd.f32 %v922, %v991
  %v1048 = vadd.f32 %v923, %v992
  %v1049 = vadd.f32 %v924, %v993
  %v1050 = vadd.f32 %v925, %v994
  %v1051 = vadd.f32 %v926, %v995
  %v1052 = vadd.f32 %v927, %v996
  %v1053 = vadd.f32 %v928, %v997
  %v1054 = vadd.f32 %v929, %v998
  %v1055 = vadd.f32 %v930, %v999
  %v1056 = vadd.f32 %v931, %v1000
  %v1057 = vadd.f32 %v932, %v1001
  %v1058 = vadd.f32 %v933, %v1002
  %v1059 = vadd.f32 %v934, %v1003
  %v1060 = vadd.f32 %v935, %v1004
  %v1061 = vadd.f32 %v936, %v1005
  %v1062 = vadd.f32 %v937, %v1006
  %v1063 = vadd.f32 %v938, %v1007
  %v1064 = vadd.f32 %v939, %v1008
  %v1065 = vadd.f32 %v940, %v1009
  %v1066 = vadd.f32 %v941, %v1010
  %v1067 = vadd.f32 %v942, %v1011
  %v1068 = vadd.f32 %v943, %v1012
  %v1069 = vadd.f32 %v944, %v1013
  %v1070 = vadd.f32 %v945, %v1014
  %v1071 = vadd.f32 %v946, %v1015
  %v1072 = vadd.f32 %v947, %v1016
  %v1073 = vadd.f32 %v948, %v1017
  %v1074 = vadd.f32 %v949, %v1018
  %v1075 = vadd.f32 %v950, %v1019
  %v1076 = vadd.f32 %v951, %v1020
  %v1077 = vadd.f32 %v952, %v1021
  %v1078 = vadd.f32 %v953, %v1022
  %v1079 = vadd.f32 %v954, %v1023
  %v1080 = vadd.f32 %v955, %v1024
  %v1081 = vadd.f32 %v956, %v1025
  %v1082 = vadd.f32 %v957, %v1026
  %v1083 = vadd.f32 %v958, %v1027
  %v1084 = vadd.f32 %v959, %v1028
  %v1085 = vadd.f32 %v960, %v1029
  %v1086 = vadd.f32 %v961, %v1030
  %v1087 = vadd.f32 %v962, %v1031
  %v1088 = vadd.f32 %v963, %v1032
  %v1089 = vadd.f32 %v964, %v1033
  %s1090 = scalar_lea.vmem %s1, 6
  %v1091 = vld [vmem:[%s1090] ss:$8 sm:$0x3]
  %v1093 = vlaneseq
  %v1094 = vshrl.u32 %v1093, 7
  %v1095 = vsub.s32 0, %v1094
  %v1096 = vrot.slane %v1091, %v1095
  %v1097 = vlaneseq
  %v1098 = vshrl.u32 %v1097, 7
  %v1099 = vsub.s32 1, %v1098
  %v1100 = vrot.slane %v1091, %v1099
  %v1103 = vmul.f32 %v25, %v1096
  %v1104 = vmul.f32 %v26, %v1100
  %v1105 = vmul.f32 %v27, %v1096
  %v1106 = vmul.f32 %v28, %v1100
  %v1107 = vmul.f32 %v29, %v1096
  %v1108 = vmul.f32 %v30, %v1100
  %v1109 = vmul.f32 %v31, %v1096
  %v1110 = vmul.f32 %v32, %v1100
  %v1111 = vmul.f32 %v33, %v1096
  %v1112 = vmul.f32 %v34, %v1100
  %v1113 = vmul.f32 %v35, %v1096
  %v1114 = vmul.f32 %v36, %v1100
  %v1115 = vmul.f32 %v37, %v1096
  %v1116 = vmul.f32 %v38, %v1100
  %v1117 = vmul.f32 %v39, %v1096
  %v1118 = vmul.f32 %v40, %v1100
  %v1119 = vmul.f32 %v41, %v1096
  %v1120 = vmul.f32 %v42, %v1100
  %v1121 = vmul.f32 %v43, %v1096
  %v1122 = vmul.f32 %v44, %v1100
  %v1123 = vmul.f32 %v45, %v1096
  %v1124 = vmul.f32 %v46, %v1100
  %v1125 = vmul.f32 %v47, %v1096
  %v1126 = vmul.f32 %v48, %v1100
  %v1127 = vmul.f32 %v49, %v1096
  %v1128 = vmul.f32 %v50, %v1100
  %v1129 = vmul.f32 %v51, %v1096
  %v1130 = vmul.f32 %v52, %v1100
  %v1131 = vmul.f32 %v53, %v1096
  %v1132 = vmul.f32 %v54, %v1100
  %v1133 = vmul.f32 %v55, %v1096
  %v1134 = vmul.f32 %v56, %v1100
  %v1135 = vmul.f32 %v57, %v1096
  %v1136 = vmul.f32 %v58, %v1100
  %v1137 = vmul.f32 %v59, %v1096
  %v1138 = vmul.f32 %v60, %v1100
  %v1139 = vmul.f32 %v61, %v1096
  %v1140 = vmul.f32 %v62, %v1100
  %v1141 = vmul.f32 %v63, %v1096
  %v1142 = vmul.f32 %v64, %v1100
  %v1143 = vmul.f32 %v65, %v1096
  %v1144 = vmul.f32 %v66, %v1100
  %v1145 = vmul.f32 %v67, %v1096
  %v1146 = vmul.f32 %v68, %v1100
  %v1147 = vmul.f32 %v69, %v1096
  %v1148 = vmul.f32 %v70, %v1100
  %v1149 = vmul.f32 %v71, %v1096
  %v1150 = vmul.f32 %v72, %v1100
  %v1151 = vmul.f32 %v73, %v1096
  %v1152 = vmul.f32 %v74, %v1100
  %v1153 = vmul.f32 %v75, %v1096
  %v1154 = vmul.f32 %v76, %v1100
  %v1155 = vmul.f32 %v77, %v1096
  %v1156 = vmul.f32 %v78, %v1100
  %v1157 = vmul.f32 %v79, %v1096
  %v1158 = vmul.f32 %v80, %v1100
  %v1159 = vadd.f32 %v1034, %v1103
  %v1160 = vadd.f32 %v1035, %v1104
  %v1161 = vadd.f32 %v1036, %v1105
  %v1162 = vadd.f32 %v1037, %v1106
  %v1163 = vadd.f32 %v1038, %v1107
  %v1164 = vadd.f32 %v1039, %v1108
  %v1165 = vadd.f32 %v1040, %v1109
  %v1166 = vadd.f32 %v1041, %v1110
  %v1167 = vadd.f32 %v1042, %v1111
  %v1168 = vadd.f32 %v1043, %v1112
  %v1169 = vadd.f32 %v1044, %v1113
  %v1170 = vadd.f32 %v1045, %v1114
  %v1171 = vadd.f32 %v1046, %v1115
  %v1172 = vadd.f32 %v1047, %v1116
  %v1173 = vadd.f32 %v1048, %v1117
  %v1174 = vadd.f32 %v1049, %v1118
  %v1175 = vadd.f32 %v1050, %v1119
  %v1176 = vadd.f32 %v1051, %v1120
  %v1177 = vadd.f32 %v1052, %v1121
  %v1178 = vadd.f32 %v1053, %v1122
  %v1179 = vadd.f32 %v1054, %v1123
  %v1180 = vadd.f32 %v1055, %v1124
  %v1181 = vadd.f32 %v1056, %v1125
  %v1182 = vadd.f32 %v1057, %v1126
  %v1183 = vadd.f32 %v1058, %v1127
  %v1184 = vadd.f32 %v1059, %v1128
  %v1185 = vadd.f32 %v1060, %v1129
  %v1186 = vadd.f32 %v1061, %v1130
  %v1187 = vadd.f32 %v1062, %v1131
  %v1188 = vadd.f32 %v1063, %v1132
  %v1189 = vadd.f32 %v1064, %v1133
  %v1190 = vadd.f32 %v1065, %v1134
  %v1191 = vadd.f32 %v1066, %v1135
  %v1192 = vadd.f32 %v1067, %v1136
  %v1193 = vadd.f32 %v1068, %v1137
  %v1194 = vadd.f32 %v1069, %v1138
  %v1195 = vadd.f32 %v1070, %v1139
  %v1196 = vadd.f32 %v1071, %v1140
  %v1197 = vadd.f32 %v1072, %v1141
  %v1198 = vadd.f32 %v1073, %v1142
  %v1199 = vadd.f32 %v1074, %v1143
  %v1200 = vadd.f32 %v1075, %v1144
  %v1201 = vadd.f32 %v1076, %v1145
  %v1202 = vadd.f32 %v1077, %v1146
  %v1203 = vadd.f32 %v1078, %v1147
  %v1204 = vadd.f32 %v1079, %v1148
  %v1205 = vadd.f32 %v1080, %v1149
  %v1206 = vadd.f32 %v1081, %v1150
  %v1207 = vadd.f32 %v1082, %v1151
  %v1208 = vadd.f32 %v1083, %v1152
  %v1209 = vadd.f32 %v1084, %v1153
  %v1210 = vadd.f32 %v1085, %v1154
  %v1211 = vadd.f32 %v1086, %v1155
  %v1212 = vadd.f32 %v1087, %v1156
  %v1213 = vadd.f32 %v1088, %v1157
  %v1214 = vadd.f32 %v1089, %v1158
  %s1215 = scalar_lea.vmem %s1, 7
  %v1216 = vld [vmem:[%s1215] ss:$8 sm:$0x3]
  %v1218 = vlaneseq
  %v1219 = vshrl.u32 %v1218, 7
  %v1220 = vsub.s32 0, %v1219
  %v1221 = vrot.slane %v1216, %v1220
  %v1222 = vlaneseq
  %v1223 = vshrl.u32 %v1222, 7
  %v1224 = vsub.s32 1, %v1223
  %v1225 = vrot.slane %v1216, %v1224
  %v1228 = vmul.f32 %v152, %v1221
  %v1229 = vmul.f32 %v153, %v1225
  %v1230 = vmul.f32 %v184, %v1221
  %v1231 = vmul.f32 %v185, %v1225
  %v1232 = vmul.f32 %v154, %v1221
  %v1233 = vmul.f32 %v155, %v1225
  %v1234 = vmul.f32 %v186, %v1221
  %v1235 = vmul.f32 %v187, %v1225
  %v1236 = vmul.f32 %v156, %v1221
  %v1237 = vmul.f32 %v157, %v1225
  %v1238 = vmul.f32 %v188, %v1221
  %v1239 = vmul.f32 %v189, %v1225
  %v1240 = vmul.f32 %v158, %v1221
  %v1241 = vmul.f32 %v159, %v1225
  %v1242 = vmul.f32 %v190, %v1221
  %v1243 = vmul.f32 %v191, %v1225
  %v1244 = vmul.f32 %v160, %v1221
  %v1245 = vmul.f32 %v161, %v1225
  %v1246 = vmul.f32 %v192, %v1221
  %v1247 = vmul.f32 %v193, %v1225
  %v1248 = vmul.f32 %v162, %v1221
  %v1249 = vmul.f32 %v163, %v1225
  %v1250 = vmul.f32 %v194, %v1221
  %v1251 = vmul.f32 %v195, %v1225
  %v1252 = vmul.f32 %v164, %v1221
  %v1253 = vmul.f32 %v165, %v1225
  %v1254 = vmul.f32 %v196, %v1221
  %v1255 = vmul.f32 %v197, %v1225
  %v1256 = vmul.f32 %v166, %v1221
  %v1257 = vmul.f32 %v167, %v1225
  %v1258 = vmul.f32 %v198, %v1221
  %v1259 = vmul.f32 %v199, %v1225
  %v1260 = vmul.f32 %v168, %v1221
  %v1261 = vmul.f32 %v169, %v1225
  %v1262 = vmul.f32 %v200, %v1221
  %v1263 = vmul.f32 %v201, %v1225
  %v1264 = vmul.f32 %v170, %v1221
  %v1265 = vmul.f32 %v171, %v1225
  %v1266 = vmul.f32 %v202, %v1221
  %v1267 = vmul.f32 %v203, %v1225
  %v1268 = vmul.f32 %v172, %v1221
  %v1269 = vmul.f32 %v173, %v1225
  %v1270 = vmul.f32 %v204, %v1221
  %v1271 = vmul.f32 %v205, %v1225
  %v1272 = vmul.f32 %v174, %v1221
  %v1273 = vmul.f32 %v175, %v1225
  %v1274 = vmul.f32 %v206, %v1221
  %v1275 = vmul.f32 %v207, %v1225
  %v1276 = vmul.f32 %v176, %v1221
  %v1277 = vmul.f32 %v177, %v1225
  %v1278 = vmul.f32 %v208, %v1221
  %v1279 = vmul.f32 %v209, %v1225
  %v1280 = vmul.f32 %v178, %v1221
  %v1281 = vmul.f32 %v179, %v1225
  %v1282 = vmul.f32 %v210, %v1221
  %v1283 = vmul.f32 %v211, %v1225
  %v1284 = vadd.f32 %v1159, %v1228
  %v1285 = vadd.f32 %v1160, %v1229
  %v1286 = vadd.f32 %v1161, %v1230
  %v1287 = vadd.f32 %v1162, %v1231
  %v1288 = vadd.f32 %v1163, %v1232
  %v1289 = vadd.f32 %v1164, %v1233
  %v1290 = vadd.f32 %v1165, %v1234
  %v1291 = vadd.f32 %v1166, %v1235
  %v1292 = vadd.f32 %v1167, %v1236
  %v1293 = vadd.f32 %v1168, %v1237
  %v1294 = vadd.f32 %v1169, %v1238
  %v1295 = vadd.f32 %v1170, %v1239
  %v1296 = vadd.f32 %v1171, %v1240
  %v1297 = vadd.f32 %v1172, %v1241
  %v1298 = vadd.f32 %v1173, %v1242
  %v1299 = vadd.f32 %v1174, %v1243
  %v1300 = vadd.f32 %v1175, %v1244
  %v1301 = vadd.f32 %v1176, %v1245
  %v1302 = vadd.f32 %v1177, %v1246
  %v1303 = vadd.f32 %v1178, %v1247
  %v1304 = vadd.f32 %v1179, %v1248
  %v1305 = vadd.f32 %v1180, %v1249
  %v1306 = vadd.f32 %v1181, %v1250
  %v1307 = vadd.f32 %v1182, %v1251
  %v1308 = vadd.f32 %v1183, %v1252
  %v1309 = vadd.f32 %v1184, %v1253
  %v1310 = vadd.f32 %v1185, %v1254
  %v1311 = vadd.f32 %v1186, %v1255
  %v1312 = vadd.f32 %v1187, %v1256
  %v1313 = vadd.f32 %v1188, %v1257
  %v1314 = vadd.f32 %v1189, %v1258
  %v1315 = vadd.f32 %v1190, %v1259
  %v1316 = vadd.f32 %v1191, %v1260
  %v1317 = vadd.f32 %v1192, %v1261
  %v1318 = vadd.f32 %v1193, %v1262
  %v1319 = vadd.f32 %v1194, %v1263
  %v1320 = vadd.f32 %v1195, %v1264
  %v1321 = vadd.f32 %v1196, %v1265
  %v1322 = vadd.f32 %v1197, %v1266
  %v1323 = vadd.f32 %v1198, %v1267
  %v1324 = vadd.f32 %v1199, %v1268
  %v1325 = vadd.f32 %v1200, %v1269
  %v1326 = vadd.f32 %v1201, %v1270
  %v1327 = vadd.f32 %v1202, %v1271
  %v1328 = vadd.f32 %v1203, %v1272
  %v1329 = vadd.f32 %v1204, %v1273
  %v1330 = vadd.f32 %v1205, %v1274
  %v1331 = vadd.f32 %v1206, %v1275
  %v1332 = vadd.f32 %v1207, %v1276
  %v1333 = vadd.f32 %v1208, %v1277
  %v1334 = vadd.f32 %v1209, %v1278
  %v1335 = vadd.f32 %v1210, %v1279
  %v1336 = vadd.f32 %v1211, %v1280
  %v1337 = vadd.f32 %v1212, %v1281
  %v1338 = vadd.f32 %v1213, %v1282
  %v1339 = vadd.f32 %v1214, %v1283
  %s1340 = scalar_lea.vmem %s1, 16
  %v1341 = vld [vmem:[%s1340] ss:$8 sm:$0x3]
  %v1343 = vlaneseq
  %v1344 = vshrl.u32 %v1343, 7
  %v1345 = vsub.s32 0, %v1344
  %v1346 = vrot.slane %v1341, %v1345
  %v1347 = vlaneseq
  %v1348 = vshrl.u32 %v1347, 7
  %v1349 = vsub.s32 1, %v1348
  %v1350 = vrot.slane %v1341, %v1349
  %v1353 = vmul.f32 %v281, %v1346
  %v1354 = vmul.f32 %v282, %v1350
  %v1355 = vmul.f32 %v313, %v1346
  %v1356 = vmul.f32 %v314, %v1350
  %v1357 = vmul.f32 %v283, %v1346
  %v1358 = vmul.f32 %v284, %v1350
  %v1359 = vmul.f32 %v315, %v1346
  %v1360 = vmul.f32 %v316, %v1350
  %v1361 = vmul.f32 %v285, %v1346
  %v1362 = vmul.f32 %v286, %v1350
  %v1363 = vmul.f32 %v317, %v1346
  %v1364 = vmul.f32 %v318, %v1350
  %v1365 = vmul.f32 %v287, %v1346
  %v1366 = vmul.f32 %v288, %v1350
  %v1367 = vmul.f32 %v319, %v1346
  %v1368 = vmul.f32 %v320, %v1350
  %v1369 = vmul.f32 %v289, %v1346
  %v1370 = vmul.f32 %v290, %v1350
  %v1371 = vmul.f32 %v321, %v1346
  %v1372 = vmul.f32 %v322, %v1350
  %v1373 = vmul.f32 %v291, %v1346
  %v1374 = vmul.f32 %v292, %v1350
  %v1375 = vmul.f32 %v323, %v1346
  %v1376 = vmul.f32 %v324, %v1350
  %v1377 = vmul.f32 %v293, %v1346
  %v1378 = vmul.f32 %v294, %v1350
  %v1379 = vmul.f32 %v325, %v1346
  %v1380 = vmul.f32 %v326, %v1350
  %v1381 = vmul.f32 %v295, %v1346
  %v1382 = vmul.f32 %v296, %v1350
  %v1383 = vmul.f32 %v327, %v1346
  %v1384 = vmul.f32 %v328, %v1350
  %v1385 = vmul.f32 %v297, %v1346
  %v1386 = vmul.f32 %v298, %v1350
  %v1387 = vmul.f32 %v329, %v1346
  %v1388 = vmul.f32 %v330, %v1350
  %v1389 = vmul.f32 %v299, %v1346
  %v1390 = vmul.f32 %v300, %v1350
  %v1391 = vmul.f32 %v331, %v1346
  %v1392 = vmul.f32 %v332, %v1350
  %v1393 = vmul.f32 %v301, %v1346
  %v1394 = vmul.f32 %v302, %v1350
  %v1395 = vmul.f32 %v333, %v1346
  %v1396 = vmul.f32 %v334, %v1350
  %v1397 = vmul.f32 %v303, %v1346
  %v1398 = vmul.f32 %v304, %v1350
  %v1399 = vmul.f32 %v335, %v1346
  %v1400 = vmul.f32 %v336, %v1350
  %v1401 = vmul.f32 %v305, %v1346
  %v1402 = vmul.f32 %v306, %v1350
  %v1403 = vmul.f32 %v337, %v1346
  %v1404 = vmul.f32 %v338, %v1350
  %v1405 = vmul.f32 %v307, %v1346
  %v1406 = vmul.f32 %v308, %v1350
  %v1407 = vmul.f32 %v339, %v1346
  %v1408 = vmul.f32 %v340, %v1350
  %v1409 = vadd.f32 %v1284, %v1353
  %v1410 = vadd.f32 %v1285, %v1354
  %v1411 = vadd.f32 %v1286, %v1355
  %v1412 = vadd.f32 %v1287, %v1356
  %v1413 = vadd.f32 %v1288, %v1357
  %v1414 = vadd.f32 %v1289, %v1358
  %v1415 = vadd.f32 %v1290, %v1359
  %v1416 = vadd.f32 %v1291, %v1360
  %v1417 = vadd.f32 %v1292, %v1361
  %v1418 = vadd.f32 %v1293, %v1362
  %v1419 = vadd.f32 %v1294, %v1363
  %v1420 = vadd.f32 %v1295, %v1364
  %v1421 = vadd.f32 %v1296, %v1365
  %v1422 = vadd.f32 %v1297, %v1366
  %v1423 = vadd.f32 %v1298, %v1367
  %v1424 = vadd.f32 %v1299, %v1368
  %v1425 = vadd.f32 %v1300, %v1369
  %v1426 = vadd.f32 %v1301, %v1370
  %v1427 = vadd.f32 %v1302, %v1371
  %v1428 = vadd.f32 %v1303, %v1372
  %v1429 = vadd.f32 %v1304, %v1373
  %v1430 = vadd.f32 %v1305, %v1374
  %v1431 = vadd.f32 %v1306, %v1375
  %v1432 = vadd.f32 %v1307, %v1376
  %v1433 = vadd.f32 %v1308, %v1377
  %v1434 = vadd.f32 %v1309, %v1378
  %v1435 = vadd.f32 %v1310, %v1379
  %v1436 = vadd.f32 %v1311, %v1380
  %v1437 = vadd.f32 %v1312, %v1381
  %v1438 = vadd.f32 %v1313, %v1382
  %v1439 = vadd.f32 %v1314, %v1383
  %v1440 = vadd.f32 %v1315, %v1384
  %v1441 = vadd.f32 %v1316, %v1385
  %v1442 = vadd.f32 %v1317, %v1386
  %v1443 = vadd.f32 %v1318, %v1387
  %v1444 = vadd.f32 %v1319, %v1388
  %v1445 = vadd.f32 %v1320, %v1389
  %v1446 = vadd.f32 %v1321, %v1390
  %v1447 = vadd.f32 %v1322, %v1391
  %v1448 = vadd.f32 %v1323, %v1392
  %v1449 = vadd.f32 %v1324, %v1393
  %v1450 = vadd.f32 %v1325, %v1394
  %v1451 = vadd.f32 %v1326, %v1395
  %v1452 = vadd.f32 %v1327, %v1396
  %v1453 = vadd.f32 %v1328, %v1397
  %v1454 = vadd.f32 %v1329, %v1398
  %v1455 = vadd.f32 %v1330, %v1399
  %v1456 = vadd.f32 %v1331, %v1400
  %v1457 = vadd.f32 %v1332, %v1401
  %v1458 = vadd.f32 %v1333, %v1402
  %v1459 = vadd.f32 %v1334, %v1403
  %v1460 = vadd.f32 %v1335, %v1404
  %v1461 = vadd.f32 %v1336, %v1405
  %v1462 = vadd.f32 %v1337, %v1406
  %v1463 = vadd.f32 %v1338, %v1407
  %v1464 = vadd.f32 %v1339, %v1408
  %v1465 = vadd.s32 %v146, 8
  %vm1466 = vcmp.lt.s32.totalorder %v146, 14
  %vm1467 = vcmp.lt.s32.totalorder %v1465, 14
  %v1468 = vsel %vm1466, 1, 0
  %v1469 = vsel %vm1467, 1, 0
  %v1470 = vcvt.s32.f32 %v1468
  %v1471 = vcvt.s32.f32 %v1469
  %v1472 = vmul.f32 %v1409, %v1470
  %v1473 = vmul.f32 %v1410, %v1470
  %v1474 = vmul.f32 %v1411, %v1471
  %v1475 = vmul.f32 %v1412, %v1471
  %v1476 = vmul.f32 %v1413, %v1470
  %v1477 = vmul.f32 %v1414, %v1470
  %v1478 = vmul.f32 %v1415, %v1471
  %v1479 = vmul.f32 %v1416, %v1471
  %v1480 = vmul.f32 %v1417, %v1470
  %v1481 = vmul.f32 %v1418, %v1470
  %v1482 = vmul.f32 %v1419, %v1471
  %v1483 = vmul.f32 %v1420, %v1471
  %v1484 = vmul.f32 %v1421, %v1470
  %v1485 = vmul.f32 %v1422, %v1470
  %v1486 = vmul.f32 %v1423, %v1471
  %v1487 = vmul.f32 %v1424, %v1471
  %v1488 = vmul.f32 %v1425, %v1470
  %v1489 = vmul.f32 %v1426, %v1470
  %v1490 = vmul.f32 %v1427, %v1471
  %v1491 = vmul.f32 %v1428, %v1471
  %v1492 = vmul.f32 %v1429, %v1470
  %v1493 = vmul.f32 %v1430, %v1470
  %v1494 = vmul.f32 %v1431, %v1471
  %v1495 = vmul.f32 %v1432, %v1471
  %v1496 = vmul.f32 %v1433, %v1470
  %v1497 = vmul.f32 %v1434, %v1470
  %v1498 = vmul.f32 %v1435, %v1471
  %v1499 = vmul.f32 %v1436, %v1471
  %v1500 = vmul.f32 %v1437, %v1470
  %v1501 = vmul.f32 %v1438, %v1470
  %v1502 = vmul.f32 %v1439, %v1471
  %v1503 = vmul.f32 %v1440, %v1471
  %v1504 = vmul.f32 %v1441, %v1470
  %v1505 = vmul.f32 %v1442, %v1470
  %v1506 = vmul.f32 %v1443, %v1471
  %v1507 = vmul.f32 %v1444, %v1471
  %v1508 = vmul.f32 %v1445, %v1470
  %v1509 = vmul.f32 %v1446, %v1470
  %v1510 = vmul.f32 %v1447, %v1471
  %v1511 = vmul.f32 %v1448, %v1471
  %v1512 = vmul.f32 %v1449, %v1470
  %v1513 = vmul.f32 %v1450, %v1470
  %v1514 = vmul.f32 %v1451, %v1471
  %v1515 = vmul.f32 %v1452, %v1471
  %v1516 = vmul.f32 %v1453, %v1470
  %v1517 = vmul.f32 %v1454, %v1470
  %v1518 = vmul.f32 %v1455, %v1471
  %v1519 = vmul.f32 %v1456, %v1471
  %v1520 = vmul.f32 %v1457, %v1470
  %v1521 = vmul.f32 %v1458, %v1470
  %v1522 = vmul.f32 %v1459, %v1471
  %v1523 = vmul.f32 %v1460, %v1471
  %v1524 = vmul.f32 %v1461, %v1470
  %v1525 = vmul.f32 %v1462, %v1470
  %v1526 = vmul.f32 %v1463, %v1471
  %v1527 = vmul.f32 %v1464, %v1471
  %v1528 = vadd.f32 %v1472, %v1474
  %v1529 = vadd.f32 %v1528, %v1476
  %v1530 = vadd.f32 %v1529, %v1478
  %v1531 = vadd.f32 %v1530, %v1480
  %v1532 = vadd.f32 %v1531, %v1482
  %v1533 = vadd.f32 %v1532, %v1484
  %v1534 = vadd.f32 %v1533, %v1486
  %v1535 = vadd.f32 %v1534, %v1488
  %v1536 = vadd.f32 %v1535, %v1490
  %v1537 = vadd.f32 %v1536, %v1492
  %v1538 = vadd.f32 %v1537, %v1494
  %v1539 = vadd.f32 %v1538, %v1496
  %v1540 = vadd.f32 %v1539, %v1498
  %v1541 = vadd.f32 %v1540, %v1500
  %v1542 = vadd.f32 %v1541, %v1502
  %v1543 = vadd.f32 %v1542, %v1504
  %v1544 = vadd.f32 %v1543, %v1506
  %v1545 = vadd.f32 %v1544, %v1508
  %v1546 = vadd.f32 %v1545, %v1510
  %v1547 = vadd.f32 %v1546, %v1512
  %v1548 = vadd.f32 %v1547, %v1514
  %v1549 = vadd.f32 %v1548, %v1516
  %v1550 = vadd.f32 %v1549, %v1518
  %v1551 = vadd.f32 %v1550, %v1520
  %v1552 = vadd.f32 %v1551, %v1522
  %v1553 = vadd.f32 %v1552, %v1524
  %v1554 = vadd.f32 %v1553, %v1526
  %v1555 = vrot.slane %v1554, 4
  %v1556 = vadd.f32 %v1554, %v1555
  %v1557 = vrot.slane %v1556, 2
  %v1558 = vadd.f32 %v1556, %v1557
  %v1559 = vrot.slane %v1558, 1
  %v1560 = vadd.f32 %v1558, %v1559
  %v1561 = vadd.f32 %v1473, %v1475
  %v1562 = vadd.f32 %v1561, %v1477
  %v1563 = vadd.f32 %v1562, %v1479
  %v1564 = vadd.f32 %v1563, %v1481
  %v1565 = vadd.f32 %v1564, %v1483
  %v1566 = vadd.f32 %v1565, %v1485
  %v1567 = vadd.f32 %v1566, %v1487
  %v1568 = vadd.f32 %v1567, %v1489
  %v1569 = vadd.f32 %v1568, %v1491
  %v1570 = vadd.f32 %v1569, %v1493
  %v1571 = vadd.f32 %v1570, %v1495
  %v1572 = vadd.f32 %v1571, %v1497
  %v1573 = vadd.f32 %v1572, %v1499
  %v1574 = vadd.f32 %v1573, %v1501
  %v1575 = vadd.f32 %v1574, %v1503
  %v1576 = vadd.f32 %v1575, %v1505
  %v1577 = vadd.f32 %v1576, %v1507
  %v1578 = vadd.f32 %v1577, %v1509
  %v1579 = vadd.f32 %v1578, %v1511
  %v1580 = vadd.f32 %v1579, %v1513
  %v1581 = vadd.f32 %v1580, %v1515
  %v1582 = vadd.f32 %v1581, %v1517
  %v1583 = vadd.f32 %v1582, %v1519
  %v1584 = vadd.f32 %v1583, %v1521
  %v1585 = vadd.f32 %v1584, %v1523
  %v1586 = vadd.f32 %v1585, %v1525
  %v1587 = vadd.f32 %v1586, %v1527
  %v1588 = vrot.slane %v1587, 4
  %v1589 = vadd.f32 %v1587, %v1588
  %v1590 = vrot.slane %v1589, 2
  %v1591 = vadd.f32 %v1589, %v1590
  %v1592 = vrot.slane %v1591, 1
  %v1593 = vadd.f32 %v1591, %v1592
  %v1594 = vrcp.pop 196.0
  %v1595 = vmul.f32 %v1560, %v1594
  %v1596 = vmul.f32 %v1593, %v1594
  %v1597 = vsub.f32 %v1409, %v1595
  %v1598 = vsub.f32 %v1410, %v1596
  %v1599 = vsub.f32 %v1411, %v1595
  %v1600 = vsub.f32 %v1412, %v1596
  %v1601 = vsub.f32 %v1413, %v1595
  %v1602 = vsub.f32 %v1414, %v1596
  %v1603 = vsub.f32 %v1415, %v1595
  %v1604 = vsub.f32 %v1416, %v1596
  %v1605 = vsub.f32 %v1417, %v1595
  %v1606 = vsub.f32 %v1418, %v1596
  %v1607 = vsub.f32 %v1419, %v1595
  %v1608 = vsub.f32 %v1420, %v1596
  %v1609 = vsub.f32 %v1421, %v1595
  %v1610 = vsub.f32 %v1422, %v1596
  %v1611 = vsub.f32 %v1423, %v1595
  %v1612 = vsub.f32 %v1424, %v1596
  %v1613 = vsub.f32 %v1425, %v1595
  %v1614 = vsub.f32 %v1426, %v1596
  %v1615 = vsub.f32 %v1427, %v1595
  %v1616 = vsub.f32 %v1428, %v1596
  %v1617 = vsub.f32 %v1429, %v1595
  %v1618 = vsub.f32 %v1430, %v1596
  %v1619 = vsub.f32 %v1431, %v1595
  %v1620 = vsub.f32 %v1432, %v1596
  %v1621 = vsub.f32 %v1433, %v1595
  %v1622 = vsub.f32 %v1434, %v1596
  %v1623 = vsub.f32 %v1435, %v1595
  %v1624 = vsub.f32 %v1436, %v1596
  %v1625 = vsub.f32 %v1437, %v1595
  %v1626 = vsub.f32 %v1438, %v1596
  %v1627 = vsub.f32 %v1439, %v1595
  %v1628 = vsub.f32 %v1440, %v1596
  %v1629 = vsub.f32 %v1441, %v1595
  %v1630 = vsub.f32 %v1442, %v1596
  %v1631 = vsub.f32 %v1443, %v1595
  %v1632 = vsub.f32 %v1444, %v1596
  %v1633 = vsub.f32 %v1445, %v1595
  %v1634 = vsub.f32 %v1446, %v1596
  %v1635 = vsub.f32 %v1447, %v1595
  %v1636 = vsub.f32 %v1448, %v1596
  %v1637 = vsub.f32 %v1449, %v1595
  %v1638 = vsub.f32 %v1450, %v1596
  %v1639 = vsub.f32 %v1451, %v1595
  %v1640 = vsub.f32 %v1452, %v1596
  %v1641 = vsub.f32 %v1453, %v1595
  %v1642 = vsub.f32 %v1454, %v1596
  %v1643 = vsub.f32 %v1455, %v1595
  %v1644 = vsub.f32 %v1456, %v1596
  %v1645 = vsub.f32 %v1457, %v1595
  %v1646 = vsub.f32 %v1458, %v1596
  %v1647 = vsub.f32 %v1459, %v1595
  %v1648 = vsub.f32 %v1460, %v1596
  %v1649 = vsub.f32 %v1461, %v1595
  %v1650 = vsub.f32 %v1462, %v1596
  %v1651 = vsub.f32 %v1463, %v1595
  %v1652 = vsub.f32 %v1464, %v1596
  %v1653 = vmul.f32 %v1597, %v1470
  %v1654 = vmul.f32 %v1598, %v1470
  %v1655 = vmul.f32 %v1599, %v1471
  %v1656 = vmul.f32 %v1600, %v1471
  %v1657 = vmul.f32 %v1601, %v1470
  %v1658 = vmul.f32 %v1602, %v1470
  %v1659 = vmul.f32 %v1603, %v1471
  %v1660 = vmul.f32 %v1604, %v1471
  %v1661 = vmul.f32 %v1605, %v1470
  %v1662 = vmul.f32 %v1606, %v1470
  %v1663 = vmul.f32 %v1607, %v1471
  %v1664 = vmul.f32 %v1608, %v1471
  %v1665 = vmul.f32 %v1609, %v1470
  %v1666 = vmul.f32 %v1610, %v1470
  %v1667 = vmul.f32 %v1611, %v1471
  %v1668 = vmul.f32 %v1612, %v1471
  %v1669 = vmul.f32 %v1613, %v1470
  %v1670 = vmul.f32 %v1614, %v1470
  %v1671 = vmul.f32 %v1615, %v1471
  %v1672 = vmul.f32 %v1616, %v1471
  %v1673 = vmul.f32 %v1617, %v1470
  %v1674 = vmul.f32 %v1618, %v1470
  %v1675 = vmul.f32 %v1619, %v1471
  %v1676 = vmul.f32 %v1620, %v1471
  %v1677 = vmul.f32 %v1621, %v1470
  %v1678 = vmul.f32 %v1622, %v1470
  %v1679 = vmul.f32 %v1623, %v1471
  %v1680 = vmul.f32 %v1624, %v1471
  %v1681 = vmul.f32 %v1625, %v1470
  %v1682 = vmul.f32 %v1626, %v1470
  %v1683 = vmul.f32 %v1627, %v1471
  %v1684 = vmul.f32 %v1628, %v1471
  %v1685 = vmul.f32 %v1629, %v1470
  %v1686 = vmul.f32 %v1630, %v1470
  %v1687 = vmul.f32 %v1631, %v1471
  %v1688 = vmul.f32 %v1632, %v1471
  %v1689 = vmul.f32 %v1633, %v1470
  %v1690 = vmul.f32 %v1634, %v1470
  %v1691 = vmul.f32 %v1635, %v1471
  %v1692 = vmul.f32 %v1636, %v1471
  %v1693 = vmul.f32 %v1637, %v1470
  %v1694 = vmul.f32 %v1638, %v1470
  %v1695 = vmul.f32 %v1639, %v1471
  %v1696 = vmul.f32 %v1640, %v1471
  %v1697 = vmul.f32 %v1641, %v1470
  %v1698 = vmul.f32 %v1642, %v1470
  %v1699 = vmul.f32 %v1643, %v1471
  %v1700 = vmul.f32 %v1644, %v1471
  %v1701 = vmul.f32 %v1645, %v1470
  %v1702 = vmul.f32 %v1646, %v1470
  %v1703 = vmul.f32 %v1647, %v1471
  %v1704 = vmul.f32 %v1648, %v1471
  %v1705 = vmul.f32 %v1649, %v1470
  %v1706 = vmul.f32 %v1650, %v1470
  %v1707 = vmul.f32 %v1651, %v1471
  %v1708 = vmul.f32 %v1652, %v1471
  %v1709 = vmul.f32 %v1653, %v1653
  %v1710 = vmul.f32 %v1654, %v1654
  %v1711 = vmul.f32 %v1655, %v1655
  %v1712 = vmul.f32 %v1656, %v1656
  %v1713 = vmul.f32 %v1657, %v1657
  %v1714 = vmul.f32 %v1658, %v1658
  %v1715 = vmul.f32 %v1659, %v1659
  %v1716 = vmul.f32 %v1660, %v1660
  %v1717 = vmul.f32 %v1661, %v1661
  %v1718 = vmul.f32 %v1662, %v1662
  %v1719 = vmul.f32 %v1663, %v1663
  %v1720 = vmul.f32 %v1664, %v1664
  %v1721 = vmul.f32 %v1665, %v1665
  %v1722 = vmul.f32 %v1666, %v1666
  %v1723 = vmul.f32 %v1667, %v1667
  %v1724 = vmul.f32 %v1668, %v1668
  %v1725 = vmul.f32 %v1669, %v1669
  %v1726 = vmul.f32 %v1670, %v1670
  %v1727 = vmul.f32 %v1671, %v1671
  %v1728 = vmul.f32 %v1672, %v1672
  %v1729 = vmul.f32 %v1673, %v1673
  %v1730 = vmul.f32 %v1674, %v1674
  %v1731 = vmul.f32 %v1675, %v1675
  %v1732 = vmul.f32 %v1676, %v1676
  %v1733 = vmul.f32 %v1677, %v1677
  %v1734 = vmul.f32 %v1678, %v1678
  %v1735 = vmul.f32 %v1679, %v1679
  %v1736 = vmul.f32 %v1680, %v1680
  %v1737 = vmul.f32 %v1681, %v1681
  %v1738 = vmul.f32 %v1682, %v1682
  %v1739 = vmul.f32 %v1683, %v1683
  %v1740 = vmul.f32 %v1684, %v1684
  %v1741 = vmul.f32 %v1685, %v1685
  %v1742 = vmul.f32 %v1686, %v1686
  %v1743 = vmul.f32 %v1687, %v1687
  %v1744 = vmul.f32 %v1688, %v1688
  %v1745 = vmul.f32 %v1689, %v1689
  %v1746 = vmul.f32 %v1690, %v1690
  %v1747 = vmul.f32 %v1691, %v1691
  %v1748 = vmul.f32 %v1692, %v1692
  %v1749 = vmul.f32 %v1693, %v1693
  %v1750 = vmul.f32 %v1694, %v1694
  %v1751 = vmul.f32 %v1695, %v1695
  %v1752 = vmul.f32 %v1696, %v1696
  %v1753 = vmul.f32 %v1697, %v1697
  %v1754 = vmul.f32 %v1698, %v1698
  %v1755 = vmul.f32 %v1699, %v1699
  %v1756 = vmul.f32 %v1700, %v1700
  %v1757 = vmul.f32 %v1701, %v1701
  %v1758 = vmul.f32 %v1702, %v1702
  %v1759 = vmul.f32 %v1703, %v1703
  %v1760 = vmul.f32 %v1704, %v1704
  %v1761 = vmul.f32 %v1705, %v1705
  %v1762 = vmul.f32 %v1706, %v1706
  %v1763 = vmul.f32 %v1707, %v1707
  %v1764 = vmul.f32 %v1708, %v1708
  %v1765 = vadd.f32 %v1709, %v1711
  %v1766 = vadd.f32 %v1765, %v1713
  %v1767 = vadd.f32 %v1766, %v1715
  %v1768 = vadd.f32 %v1767, %v1717
  %v1769 = vadd.f32 %v1768, %v1719
  %v1770 = vadd.f32 %v1769, %v1721
  %v1771 = vadd.f32 %v1770, %v1723
  %v1772 = vadd.f32 %v1771, %v1725
  %v1773 = vadd.f32 %v1772, %v1727
  %v1774 = vadd.f32 %v1773, %v1729
  %v1775 = vadd.f32 %v1774, %v1731
  %v1776 = vadd.f32 %v1775, %v1733
  %v1777 = vadd.f32 %v1776, %v1735
  %v1778 = vadd.f32 %v1777, %v1737
  %v1779 = vadd.f32 %v1778, %v1739
  %v1780 = vadd.f32 %v1779, %v1741
  %v1781 = vadd.f32 %v1780, %v1743
  %v1782 = vadd.f32 %v1781, %v1745
  %v1783 = vadd.f32 %v1782, %v1747
  %v1784 = vadd.f32 %v1783, %v1749
  %v1785 = vadd.f32 %v1784, %v1751
  %v1786 = vadd.f32 %v1785, %v1753
  %v1787 = vadd.f32 %v1786, %v1755
  %v1788 = vadd.f32 %v1787, %v1757
  %v1789 = vadd.f32 %v1788, %v1759
  %v1790 = vadd.f32 %v1789, %v1761
  %v1791 = vadd.f32 %v1790, %v1763
  %v1792 = vrot.slane %v1791, 4
  %v1793 = vadd.f32 %v1791, %v1792
  %v1794 = vrot.slane %v1793, 2
  %v1795 = vadd.f32 %v1793, %v1794
  %v1796 = vrot.slane %v1795, 1
  %v1797 = vadd.f32 %v1795, %v1796
  %v1798 = vadd.f32 %v1710, %v1712
  %v1799 = vadd.f32 %v1798, %v1714
  %v1800 = vadd.f32 %v1799, %v1716
  %v1801 = vadd.f32 %v1800, %v1718
  %v1802 = vadd.f32 %v1801, %v1720
  %v1803 = vadd.f32 %v1802, %v1722
  %v1804 = vadd.f32 %v1803, %v1724
  %v1805 = vadd.f32 %v1804, %v1726
  %v1806 = vadd.f32 %v1805, %v1728
  %v1807 = vadd.f32 %v1806, %v1730
  %v1808 = vadd.f32 %v1807, %v1732
  %v1809 = vadd.f32 %v1808, %v1734
  %v1810 = vadd.f32 %v1809, %v1736
  %v1811 = vadd.f32 %v1810, %v1738
  %v1812 = vadd.f32 %v1811, %v1740
  %v1813 = vadd.f32 %v1812, %v1742
  %v1814 = vadd.f32 %v1813, %v1744
  %v1815 = vadd.f32 %v1814, %v1746
  %v1816 = vadd.f32 %v1815, %v1748
  %v1817 = vadd.f32 %v1816, %v1750
  %v1818 = vadd.f32 %v1817, %v1752
  %v1819 = vadd.f32 %v1818, %v1754
  %v1820 = vadd.f32 %v1819, %v1756
  %v1821 = vadd.f32 %v1820, %v1758
  %v1822 = vadd.f32 %v1821, %v1760
  %v1823 = vadd.f32 %v1822, %v1762
  %v1824 = vadd.f32 %v1823, %v1764
  %v1825 = vrot.slane %v1824, 4
  %v1826 = vadd.f32 %v1824, %v1825
  %v1827 = vrot.slane %v1826, 2
  %v1828 = vadd.f32 %v1826, %v1827
  %v1829 = vrot.slane %v1828, 1
  %v1830 = vadd.f32 %v1828, %v1829
  %v1831 = vmul.f32 %v1797, %v1594
  %v1832 = vmul.f32 %v1830, %v1594
  %v1833 = vadd.f32 %v1831, 0.001
  %v1834 = vadd.f32 %v1832, 0.001
  %v1835 = vrsqrt.pop %v1833
  %v1836 = vrsqrt.pop %v1834
  %v1837 = vld [vmem:[%s2] sm:$0x3]
  %v1839 = vlaneseq
  %v1840 = vshrl.u32 %v1839, 7
  %v1841 = vsub.s32 0, %v1840
  %v1842 = vrot.slane %v1837, %v1841
  %v1843 = vlaneseq
  %v1844 = vshrl.u32 %v1843, 7
  %v1845 = vsub.s32 1, %v1844
  %v1846 = vrot.slane %v1837, %v1845
  %v1849 = vmul.f32 %v1835, %v1842
  %v1850 = vmul.f32 %v1836, %v1846
  %v1851 = vlaneseq
  %v1852 = vshrl.u32 %v1851, 7
  %v1853 = vsub.s32 0, %v1852
  %v1854 = vrot.slane %v1849, %v1853
  %v1855 = vlaneseq
  %v1856 = vshrl.u32 %v1855, 7
  %v1857 = vsub.s32 0, %v1856
  %v1858 = vrot.slane %v1850, %v1857
  %v1859 = vmul.f32 %v1597, %v1854
  %v1860 = vmul.f32 %v1598, %v1858
  %v1861 = vmul.f32 %v1599, %v1854
  %v1862 = vmul.f32 %v1600, %v1858
  %v1863 = vmul.f32 %v1601, %v1854
  %v1864 = vmul.f32 %v1602, %v1858
  %v1865 = vmul.f32 %v1603, %v1854
  %v1866 = vmul.f32 %v1604, %v1858
  %v1867 = vmul.f32 %v1605, %v1854
  %v1868 = vmul.f32 %v1606, %v1858
  %v1869 = vmul.f32 %v1607, %v1854
  %v1870 = vmul.f32 %v1608, %v1858
  %v1871 = vmul.f32 %v1609, %v1854
  %v1872 = vmul.f32 %v1610, %v1858
  %v1873 = vmul.f32 %v1611, %v1854
  %v1874 = vmul.f32 %v1612, %v1858
  %v1875 = vmul.f32 %v1613, %v1854
  %v1876 = vmul.f32 %v1614, %v1858
  %v1877 = vmul.f32 %v1615, %v1854
  %v1878 = vmul.f32 %v1616, %v1858
  %v1879 = vmul.f32 %v1617, %v1854
  %v1880 = vmul.f32 %v1618, %v1858
  %v1881 = vmul.f32 %v1619, %v1854
  %v1882 = vmul.f32 %v1620, %v1858
  %v1883 = vmul.f32 %v1621, %v1854
  %v1884 = vmul.f32 %v1622, %v1858
  %v1885 = vmul.f32 %v1623, %v1854
  %v1886 = vmul.f32 %v1624, %v1858
  %v1887 = vmul.f32 %v1625, %v1854
  %v1888 = vmul.f32 %v1626, %v1858
  %v1889 = vmul.f32 %v1627, %v1854
  %v1890 = vmul.f32 %v1628, %v1858
  %v1891 = vmul.f32 %v1629, %v1854
  %v1892 = vmul.f32 %v1630, %v1858
  %v1893 = vmul.f32 %v1631, %v1854
  %v1894 = vmul.f32 %v1632, %v1858
  %v1895 = vmul.f32 %v1633, %v1854
  %v1896 = vmul.f32 %v1634, %v1858
  %v1897 = vmul.f32 %v1635, %v1854
  %v1898 = vmul.f32 %v1636, %v1858
  %v1899 = vmul.f32 %v1637, %v1854
  %v1900 = vmul.f32 %v1638, %v1858
  %v1901 = vmul.f32 %v1639, %v1854
  %v1902 = vmul.f32 %v1640, %v1858
  %v1903 = vmul.f32 %v1641, %v1854
  %v1904 = vmul.f32 %v1642, %v1858
  %v1905 = vmul.f32 %v1643, %v1854
  %v1906 = vmul.f32 %v1644, %v1858
  %v1907 = vmul.f32 %v1645, %v1854
  %v1908 = vmul.f32 %v1646, %v1858
  %v1909 = vmul.f32 %v1647, %v1854
  %v1910 = vmul.f32 %v1648, %v1858
  %v1911 = vmul.f32 %v1649, %v1854
  %v1912 = vmul.f32 %v1650, %v1858
  %v1913 = vmul.f32 %v1651, %v1854
  %v1914 = vmul.f32 %v1652, %v1858
  %v1915 = vld [vmem:[%s3] sm:$0x3]
  %v1917 = vlaneseq
  %v1918 = vshrl.u32 %v1917, 7
  %v1919 = vsub.s32 0, %v1918
  %v1920 = vrot.slane %v1915, %v1919
  %v1921 = vlaneseq
  %v1922 = vshrl.u32 %v1921, 7
  %v1923 = vsub.s32 1, %v1922
  %v1924 = vrot.slane %v1915, %v1923
  %v1927 = vadd.f32 %v1859, %v1920
  %v1928 = vadd.f32 %v1860, %v1924
  %v1929 = vadd.f32 %v1861, %v1920
  %v1930 = vadd.f32 %v1862, %v1924
  %v1931 = vadd.f32 %v1863, %v1920
  %v1932 = vadd.f32 %v1864, %v1924
  %v1933 = vadd.f32 %v1865, %v1920
  %v1934 = vadd.f32 %v1866, %v1924
  %v1935 = vadd.f32 %v1867, %v1920
  %v1936 = vadd.f32 %v1868, %v1924
  %v1937 = vadd.f32 %v1869, %v1920
  %v1938 = vadd.f32 %v1870, %v1924
  %v1939 = vadd.f32 %v1871, %v1920
  %v1940 = vadd.f32 %v1872, %v1924
  %v1941 = vadd.f32 %v1873, %v1920
  %v1942 = vadd.f32 %v1874, %v1924
  %v1943 = vadd.f32 %v1875, %v1920
  %v1944 = vadd.f32 %v1876, %v1924
  %v1945 = vadd.f32 %v1877, %v1920
  %v1946 = vadd.f32 %v1878, %v1924
  %v1947 = vadd.f32 %v1879, %v1920
  %v1948 = vadd.f32 %v1880, %v1924
  %v1949 = vadd.f32 %v1881, %v1920
  %v1950 = vadd.f32 %v1882, %v1924
  %v1951 = vadd.f32 %v1883, %v1920
  %v1952 = vadd.f32 %v1884, %v1924
  %v1953 = vadd.f32 %v1885, %v1920
  %v1954 = vadd.f32 %v1886, %v1924
  %v1955 = vadd.f32 %v1887, %v1920
  %v1956 = vadd.f32 %v1888, %v1924
  %v1957 = vadd.f32 %v1889, %v1920
  %v1958 = vadd.f32 %v1890, %v1924
  %v1959 = vadd.f32 %v1891, %v1920
  %v1960 = vadd.f32 %v1892, %v1924
  %v1961 = vadd.f32 %v1893, %v1920
  %v1962 = vadd.f32 %v1894, %v1924
  %v1963 = vadd.f32 %v1895, %v1920
  %v1964 = vadd.f32 %v1896, %v1924
  %v1965 = vadd.f32 %v1897, %v1920
  %v1966 = vadd.f32 %v1898, %v1924
  %v1967 = vadd.f32 %v1899, %v1920
  %v1968 = vadd.f32 %v1900, %v1924
  %v1969 = vadd.f32 %v1901, %v1920
  %v1970 = vadd.f32 %v1902, %v1924
  %v1971 = vadd.f32 %v1903, %v1920
  %v1972 = vadd.f32 %v1904, %v1924
  %v1973 = vadd.f32 %v1905, %v1920
  %v1974 = vadd.f32 %v1906, %v1924
  %v1975 = vadd.f32 %v1907, %v1920
  %v1976 = vadd.f32 %v1908, %v1924
  %v1977 = vadd.f32 %v1909, %v1920
  %v1978 = vadd.f32 %v1910, %v1924
  %v1979 = vadd.f32 %v1911, %v1920
  %v1980 = vadd.f32 %v1912, %v1924
  %v1981 = vadd.f32 %v1913, %v1920
  %v1982 = vadd.f32 %v1914, %v1924
  %1983 = vst [vmem:[%s4] sm:$0xff] %v1927
  %1984 = vst [vmem:[%s4 + $0x8] sm:$0xff] %v1928
  %1985 = vst [vmem:[%s4 + $0x10] sm:$0xff] %v1929
  %1986 = vst [vmem:[%s4 + $0x18] sm:$0xff] %v1930
  %1987 = vst [vmem:[%s4 + $0x20] sm:$0xff] %v1931
  %1988 = vst [vmem:[%s4 + $0x28] sm:$0xff] %v1932
  %1989 = vst [vmem:[%s4 + $0x30] sm:$0xff] %v1933
  %1990 = vst [vmem:[%s4 + $0x38] sm:$0xff] %v1934
  %1991 = vst [vmem:[%s4 + $0x40] sm:$0xff] %v1935
  %1992 = vst [vmem:[%s4 + $0x48] sm:$0xff] %v1936
  %1993 = vst [vmem:[%s4 + $0x50] sm:$0xff] %v1937
  %1994 = vst [vmem:[%s4 + $0x58] sm:$0xff] %v1938
  %1995 = vst [vmem:[%s4 + $0x60] sm:$0xff] %v1939
  %1996 = vst [vmem:[%s4 + $0x68] sm:$0xff] %v1940
  %1997 = vst [vmem:[%s4 + $0x70] sm:$0xff] %v1941
  %1998 = vst [vmem:[%s4 + $0x78] sm:$0xff] %v1942
  %1999 = vst [vmem:[%s4 + $0x80] sm:$0xff] %v1943
  %2000 = vst [vmem:[%s4 + $0x88] sm:$0xff] %v1944
  %2001 = vst [vmem:[%s4 + $0x90] sm:$0xff] %v1945
  %2002 = vst [vmem:[%s4 + $0x98] sm:$0xff] %v1946
  %2003 = vst [vmem:[%s4 + $0xa0] sm:$0xff] %v1947
  %2004 = vst [vmem:[%s4 + $0xa8] sm:$0xff] %v1948
  %2005 = vst [vmem:[%s4 + $0xb0] sm:$0xff] %v1949
  %2006 = vst [vmem:[%s4 + $0xb8] sm:$0xff] %v1950
  %2007 = vst [vmem:[%s4 + $0xc0] sm:$0xff] %v1951
  %2008 = vst [vmem:[%s4 + $0xc8] sm:$0xff] %v1952
  %2009 = vst [vmem:[%s4 + $0xd0] sm:$0xff] %v1953
  %2010 = vst [vmem:[%s4 + $0xd8] sm:$0xff] %v1954
  %2011 = vst [vmem:[%s4 + $0xe0] sm:$0xff] %v1955
  %2012 = vst [vmem:[%s4 + $0xe8] sm:$0xff] %v1956
  %2013 = vst [vmem:[%s4 + $0xf0] sm:$0xff] %v1957
  %2014 = vst [vmem:[%s4 + $0xf8] sm:$0xff] %v1958
  %2015 = vst [vmem:[%s4 + $0x100] sm:$0xff] %v1959
  %2016 = vst [vmem:[%s4 + $0x108] sm:$0xff] %v1960
  %2017 = vst [vmem:[%s4 + $0x110] sm:$0xff] %v1961
  %2018 = vst [vmem:[%s4 + $0x118] sm:$0xff] %v1962
  %2019 = vst [vmem:[%s4 + $0x120] sm:$0xff] %v1963
  %2020 = vst [vmem:[%s4 + $0x128] sm:$0xff] %v1964
  %2021 = vst [vmem:[%s4 + $0x130] sm:$0xff] %v1965
  %2022 = vst [vmem:[%s4 + $0x138] sm:$0xff] %v1966
  %2023 = vst [vmem:[%s4 + $0x140] sm:$0xff] %v1967
  %2024 = vst [vmem:[%s4 + $0x148] sm:$0xff] %v1968
  %2025 = vst [vmem:[%s4 + $0x150] sm:$0xff] %v1969
  %2026 = vst [vmem:[%s4 + $0x158] sm:$0xff] %v1970
  %2027 = vst [vmem:[%s4 + $0x160] sm:$0xff] %v1971
  %2028 = vst [vmem:[%s4 + $0x168] sm:$0xff] %v1972
  %2029 = vst [vmem:[%s4 + $0x170] sm:$0xff] %v1973
  %2030 = vst [vmem:[%s4 + $0x178] sm:$0xff] %v1974
  %2031 = vst [vmem:[%s4 + $0x180] sm:$0xff] %v1975
  %2032 = vst [vmem:[%s4 + $0x188] sm:$0xff] %v1976
  %2033 = vst [vmem:[%s4 + $0x190] sm:$0xff] %v1977
  %2034 = vst [vmem:[%s4 + $0x198] sm:$0xff] %v1978
  %2035 = vst [vmem:[%s4 + $0x1a0] sm:$0xff] %v1979
  %2036 = vst [vmem:[%s4 + $0x1a8] sm:$0xff] %v1980
  %2037 = vst [vmem:[%s4 + $0x1b0] sm:$0xff] %v1981
  %2038 = vst [vmem:[%s4 + $0x1b8] sm:$0xff] %v1982
  // Predicated region
  $region18: #{dwconv_bn.1} parent=0 // pred_check
    _
  $region19: #{dwconv_bn.1} parent=0 // pred_check_branch
    %2040 = sbr.rel (0) target = $region21
  $region20: #{dwconv_bn.1} parent=0 // pred_region
    _
  $region21: #{dwconv_bn.1} parent=0 // pred_fallthru
    _
  // Predicated region
  $region22: #{dwconv_bn.1} parent=0 // pred_check
    _
  $region23: #{dwconv_bn.1} parent=0 // pred_check_branch
    %2042 = sbr.rel (0) target = $region25
  $region24: #{dwconv_bn.1} parent=0 // pred_region
    _
  $region25: #{dwconv_bn.1} parent=0 // pred_fallthru
    _

</llo_original>
